<compile_context>
chip_gen: v5e
topology: v5e:2x2
jax: 0.10.0
libtpu: 0.0.40
codegen_flags: <defaults>
</compile_context>

<pallas_src>
import math
from types import SimpleNamespace

import jax
import jax.numpy as jnp
from jax.experimental import pallas as pl
from jax.experimental.pallas import tpu as pltpu

LANE = 128


# ----------------------------------------------------------------------------
# Fused per-flow kernel: 1x1 conv + cross-attention decoder + affine coupling
#   grid = (n_flows,)  ("arbitrary": flows are a sequential dependency chain)
#   mel layout inside the kernel: (C, B*Tp)  -- channels on sublanes, batch*time on lanes
# ----------------------------------------------------------------------------
def waveglow_flow_kernel(mel_in_ref, enc_ref, enc_t_ref,
                         w_ref, wqt_ref, wk_ref, wvt_ref, wot_ref, wos_ref,
                         out_mel_ref, log_s_ref, attn_ref,
                         mel_sc):
    k_flow = pl.program_id(0)
    B = enc_ref.shape[0]
    C = mel_sc.shape[0]
    H = C // 2
    Tp = mel_sc.shape[1] // B
    dk = wqt_ref.shape[1]
    scale = 1.0 / math.sqrt(dk)

    # Load mel into the resident VMEM carry on the first flow.
    @pl.when(k_flow == 0)
    def _():
        mel_sc[...] = mel_in_ref[...]

    z = mel_sc[...]                                                       # (C, B*Tp)

    # ---- invertible 1x1 conv: one MXU push for all batches -------------------
    W = w_ref[0]                                                          # (C, C)
    x = jnp.dot(W, z, preferred_element_type=jnp.float32)                 # (C, B*Tp)
    mel0 = x[:H, :]                                                       # (H, B*Tp)
    mel1 = x[H:, :]                                                       # (H, B*Tp)

    # ---- query projection, batch fused into the lane dim ---------------------
    q = jnp.dot(wqt_ref[0], mel0, preferred_element_type=jnp.float32)     # (dk, B*Tp)

    mel1_new_cols = []
    log_s_cols = []
    for b in range(B):                                                    # static unroll
        # k / v projections (tiny, per batch; enc passed in both layouts so no
        # in-kernel activation transposes are needed)
        kb = jnp.dot(enc_ref[b], wk_ref[0],
                     preferred_element_type=jnp.float32)                  # (S, dk)
        vb = jnp.dot(wvt_ref[0], enc_t_ref[b],
                     preferred_element_type=jnp.float32)                  # (dv, S)

        qb = q[:, b * Tp:(b + 1) * Tp]                                    # (dk, Tp)

        # scores in (S, Tp): time stays on lanes, softmax over sublanes.
        scores = jnp.dot(kb, qb, preferred_element_type=jnp.float32) * scale
        m = jnp.max(scores, axis=0, keepdims=True)                        # (1, Tp)
        p = jnp.exp(scores - m)                                           # (S, Tp)
        inv = pl.reciprocal(jnp.sum(p, axis=0, keepdims=True), approx=True)
        attn = p * inv                                                    # (S, Tp)

        ctx = jnp.dot(vb, attn, preferred_element_type=jnp.float32)       # (dv, Tp)
        t_b = jnp.dot(wot_ref[0], ctx, preferred_element_type=jnp.float32)  # (H, Tp)
        s_b = jnp.dot(wos_ref[0], ctx, preferred_element_type=jnp.float32)  # (H, Tp)

        mel1_b = mel1[:, b * Tp:(b + 1) * Tp]                             # (H, Tp)
        mel1_new_cols.append(jnp.exp(s_b) * mel1_b + t_b)                 # affine coupling
        log_s_cols.append(s_b)

        attn_ref[0, b] = attn                                             # lane-dense store

    # carry the updated mel for the next flow
    mel_sc[:H, :] = mel0
    mel_sc[H:, :] = jnp.concatenate(mel1_new_cols, axis=1)
    log_s_ref[0] = jnp.concatenate(log_s_cols, axis=1)

    @pl.when(k_flow == pl.num_programs(0) - 1)
    def _():
        out_mel_ref[...] = mel_sc[...]


# ----------------------------------------------------------------------------
# Parameter init (deterministic, mirrors the torch __init__ shapes; stacked per flow)
# ----------------------------------------------------------------------------
def init_waveglow_params(key, hparams):
    C = hparams.n_mel_channels
    H = C // 2
    D = hparams.d_model
    dk = hparams.d_k
    dv = hparams.d_v
    Ws, wqs, wks, wvs, wos = [], [], [], [], []
    for _ in range(hparams.n_flows):
        key, k_w, k_q, k_k, k_v, k_o = jax.random.split(key, 6)
        # Invertible1x1Conv: W = QR(normal(C, C))[0], flip first column if det < 0
        Wq_, _ = jnp.linalg.qr(jax.random.normal(k_w, (C, C), jnp.float32))
        sign = jnp.where(jnp.linalg.det(Wq_) < 0, -1.0, 1.0)
        Ws.append(Wq_.at[:, 0].multiply(sign))
        # decoder stand-in weights
        wqs.append(jax.random.normal(k_q, (H, dk), jnp.float32) * 0.1)
        wks.append(jax.random.normal(k_k, (D, dk), jnp.float32) * 0.1)
        wvs.append(jax.random.normal(k_v, (D, dv), jnp.float32) * 0.1)
        wos.append(jax.random.normal(k_o, (dv, 2 * H), jnp.float32) * 0.1)
    return dict(W=jnp.stack(Ws), wq=jnp.stack(wqs), wk=jnp.stack(wks),
                wv=jnp.stack(wvs), wo=jnp.stack(wos))


# ----------------------------------------------------------------------------
# WaveGlow forward (wrapper: trace-time layout plumbing around one pallas_call)
# ----------------------------------------------------------------------------
def waveglow_forward(params, mel, enc_output, mel_pos, src_pos, input_lengths):
    # TODO(synk): mel_pos / src_pos / input_lengths feed only the unprovided Decoder;
    # accepted for interface parity but unused here.
    B, C, T = mel.shape
    _, S, D = enc_output.shape
    nf, _, dk = params["wq"].shape
    dv = params["wv"].shape[2]
    H = C // 2

    Tp = ((T + LANE - 1) // LANE) * LANE          # pad time to a lane-dense multiple of 128

    # --- wrapper-side layout plumbing (one-time, outside the kernel) -------------
    mel_p = jnp.pad(mel, ((0, 0), (0, 0), (0, Tp - T)))                       # (B, C, Tp)
    mel2d = jnp.transpose(mel_p, (1, 0, 2)).reshape(C, B * Tp)                # (C, B*Tp)
    enc_t = jnp.transpose(enc_output, (0, 2, 1))                              # (B, D, S)

    # pre-transposed / pre-split weights (trace-time constants)
    wq_t = jnp.transpose(params["wq"], (0, 2, 1))                             # (nf, dk, H)
    wv_t = jnp.transpose(params["wv"], (0, 2, 1))                             # (nf, dv, D)
    wo_tT = jnp.transpose(params["wo"][:, :, :H], (0, 2, 1))                  # (nf, H, dv) -> t
    wo_sT = jnp.transpose(params["wo"][:, :, H:], (0, 2, 1))                  # (nf, H, dv) -> log_s

    out_mel2d, log_s_all, attn_all = pl.pallas_call(
        waveglow_flow_kernel,
        out_shape=(
            jax.ShapeDtypeStruct((C, B * Tp), jnp.float32),       # final mel (channel-major slab)
            jax.ShapeDtypeStruct((nf, H, B * Tp), jnp.float32),   # log_s per flow
            jax.ShapeDtypeStruct((nf, B, S, Tp), jnp.float32),    # alignment per flow (S, Tp)
        ),
        grid=(nf,),
        in_specs=[
            pl.BlockSpec((C, B * Tp), lambda k: (0, 0)),          # mel, DMA'd once
            pl.BlockSpec((B, S, D), lambda k: (0, 0, 0)),         # enc, DMA'd once
            pl.BlockSpec((B, D, S), lambda k: (0, 0, 0)),         # enc^T, DMA'd once
            pl.BlockSpec((1, C, C), lambda k: (k, 0, 0)),         # per-flow weights below
            pl.BlockSpec((1, dk, H), lambda k: (k, 0, 0)),
            pl.BlockSpec((1, D, dk), lambda k: (k, 0, 0)),
            pl.BlockSpec((1, dv, D), lambda k: (k, 0, 0)),
            pl.BlockSpec((1, H, dv), lambda k: (k, 0, 0)),
            pl.BlockSpec((1, H, dv), lambda k: (k, 0, 0)),
        ],
        out_specs=(
            pl.BlockSpec((C, B * Tp), lambda k: (0, 0)),          # written once at last flow
            pl.BlockSpec((1, H, B * Tp), lambda k: (k, 0, 0)),
            pl.BlockSpec((1, B, S, Tp), lambda k: (k, 0, 0, 0)),
        ),
        scratch_shapes=[pltpu.VMEM((C, B * Tp), jnp.float32)],    # mel carried across flows
        compiler_params=pltpu.CompilerParams(
            dimension_semantics=("arbitrary",)),                  # flows are sequential
    )(mel2d, enc_output, enc_t, params["W"], wq_t, params["wk"], wv_t, wo_tT, wo_sT)

    # --- unpack back to the PyTorch NCT interface --------------------------------
    out_mel = jnp.transpose(out_mel2d.reshape(C, B, Tp), (1, 0, 2))[:, :, :T]
    log_s_list = [
        jnp.transpose(log_s_all[k].reshape(H, B, Tp), (1, 0, 2))[:, :, :T]
        for k in range(nf)
    ]
    dec_enc_attn = [jnp.transpose(attn_all[k, :, :, :T], (0, 2, 1)) for k in range(nf)]

    # scalar log-determinant glue; matches torch.logdet (NaN if det <= 0)
    sign, logabs = jnp.linalg.slogdet(params["W"])
    logdet = jnp.where(sign > 0, logabs, jnp.nan)
    log_det_W_list = [jnp.float32(B * T) * logdet[k] for k in range(nf)]

    return out_mel, log_s_list, log_det_W_list, dec_enc_attn


# ----------------------------------------------------------------------------
# main
# ----------------------------------------------------------------------------
if __name__ == "__main__":
    hparams = SimpleNamespace(
        n_mel_channels=8, n_group=2, n_flows=2, n_early_every=4, n_early_size=2,
        d_model=16, d_hidden=32, n_position=32, n_symbols=32,
        symbols_embedding_dim=16, n_head=1, d_k=8, d_v=8, n_layers=1,
        dropout=0.0, d_o=16,
    )
    assert hparams.n_group % 2 == 0

    B, C, T = 2, hparams.n_mel_channels, 16       # mel: [batch, n_mel_channels, time]
    S, D = 8, hparams.d_model                     # enc_output: [batch, src_len, d_model]

    key = jax.random.PRNGKey(0)
    key, k_mel, k_enc, k_par = jax.random.split(key, 4)
    mel = jax.random.normal(k_mel, (B, C, T), jnp.float32)
    enc_output = jax.random.normal(k_enc, (B, S, D), jnp.float32)
    mel_pos = jnp.tile(jnp.arange(1, T + 1, dtype=jnp.int32)[None, :], (B, 1))
    src_pos = jnp.tile(jnp.arange(1, S + 1, dtype=jnp.int32)[None, :], (B, 1))
    input_lengths = jnp.full((B,), S, dtype=jnp.int32)

    params = init_waveglow_params(k_par, hparams)

    fwd = jax.jit(waveglow_forward)
    out_mel, log_s_list, log_det_W_list, dec_enc_attn = fwd(
        params, mel, enc_output, mel_pos, src_pos, input_lengths)

    jax.block_until_ready(out_mel)
    for x in log_s_list + log_det_W_list + dec_enc_attn:
        jax.block_until_ready(x)

    assert out_mel.shape == (B, C, T)
    assert all(s.shape == (B, C // 2, T) for s in log_s_list)
    assert all(a.shape == (B, T, S) for a in dec_enc_attn)
    assert len(log_det_W_list) == hparams.n_flows
    print("KERNEL_OK")
</pallas_src>

<mosaic_0001>
module attributes {stable_mosaic.version = 11 : i64} {
  func.func @waveglow_flow_kernel(%arg0: i32, %arg1: memref<8x256xf32, #tpu.memory_space<vmem>>, %arg2: memref<2x8x16xf32, #tpu.memory_space<vmem>>, %arg3: memref<2x16x8xf32, #tpu.memory_space<vmem>>, %arg4: memref<1x8x8xf32, #tpu.memory_space<vmem>>, %arg5: memref<1x8x4xf32, #tpu.memory_space<vmem>>, %arg6: memref<1x16x8xf32, #tpu.memory_space<vmem>>, %arg7: memref<1x8x16xf32, #tpu.memory_space<vmem>>, %arg8: memref<1x4x8xf32, #tpu.memory_space<vmem>>, %arg9: memref<1x4x8xf32, #tpu.memory_space<vmem>>, %arg10: memref<8x256xf32, #tpu.memory_space<vmem>>, %arg11: memref<1x4x256xf32, #tpu.memory_space<vmem>>, %arg12: memref<1x2x8x128xf32, #tpu.memory_space<vmem>>, %arg13: memref<8x256xf32, #tpu.memory_space<vmem>>) attributes {dimension_semantics = [#tpu.dimension_semantics<arbitrary>], iteration_bounds = array<i64: 2>, scalar_prefetch = 0 : i64, scratch_operands = 1 : i64, tpu.core_type = #tpu.core_type<tc>, window_params = [{pipeline_mode = #tpu.pipeline_mode<synchronous>, transform_indices = @transform_0, window_bounds = array<i64: 8, 256>}, {pipeline_mode = #tpu.pipeline_mode<synchronous>, transform_indices = @transform_1, window_bounds = array<i64: 2, 8, 16>}, {pipeline_mode = #tpu.pipeline_mode<synchronous>, transform_indices = @transform_2, window_bounds = array<i64: 2, 16, 8>}, {transform_indices = @transform_3, window_bounds = array<i64: 1, 8, 8>}, {transform_indices = @transform_4, window_bounds = array<i64: 1, 8, 4>}, {transform_indices = @transform_5, window_bounds = array<i64: 1, 16, 8>}, {transform_indices = @transform_6, window_bounds = array<i64: 1, 8, 16>}, {transform_indices = @transform_7, window_bounds = array<i64: 1, 4, 8>}, {transform_indices = @transform_8, window_bounds = array<i64: 1, 4, 8>}, {pipeline_mode = #tpu.pipeline_mode<synchronous>, transform_indices = @transform_9, window_bounds = array<i64: 8, 256>}, {transform_indices = @transform_10, window_bounds = array<i64: 1, 4, 256>}, {transform_indices = @transform_11, window_bounds = array<i64: 1, 2, 8, 128>}]} {
    %c0_i32 = arith.constant 0 : i32
    %0 = arith.cmpi eq, %arg0, %c0_i32 : i32
    %1 = arith.extui %0 : i1 to i32
    %c0_i32_0 = arith.constant 0 : i32
    %2 = arith.cmpi ne, %1, %c0_i32_0 : i32
    scf.if %2 {
      %c0_77 = arith.constant 0 : index
      %c0_78 = arith.constant 0 : index
      %98 = vector.load %arg1[%c0_77, %c0_78] : memref<8x256xf32, #tpu.memory_space<vmem>>, vector<8x256xf32>
      %c0_79 = arith.constant 0 : index
      %c0_80 = arith.constant 0 : index
      %99 = vector.load %arg13[%c0_79, %c0_80] : memref<8x256xf32, #tpu.memory_space<vmem>>, vector<8x256xf32>
      tpu.vector_store %arg13[%c0_79, %c0_80], %98 {strides = array<i32>} : memref<8x256xf32, #tpu.memory_space<vmem>>, vector<8x256xf32>,
    } else {
    }
    %c0 = arith.constant 0 : index
    %c0_1 = arith.constant 0 : index
    %3 = vector.load %arg13[%c0, %c0_1] : memref<8x256xf32, #tpu.memory_space<vmem>>, vector<8x256xf32>
    %c0_2 = arith.constant 0 : index
    %c0_3 = arith.constant 0 : index
    %c0_4 = arith.constant 0 : index
    %4 = vector.load %arg4[%c0_2, %c0_3, %c0_4] : memref<1x8x8xf32, #tpu.memory_space<vmem>>, vector<1x8x8xf32>
    %5 = vector.shape_cast %4 : vector<1x8x8xf32> to vector<8x8xf32>
    %cst = arith.constant dense<0.000000e+00> : vector<8x256xf32>
    %6 = tpu.matmul %5, %3, %cst {dimension_numbers = #tpu.dot_dimension_numbers<[1], [0], [0], [1], [0, 0, 1, 1], [], []>} : vector<8x8xf32>, vector<8x256xf32>, vector<8x256xf32> -> vector<8x256xf32>
    %7 = vector.extract_strided_slice %6 {offsets = [0, 0], sizes = [4, 256], strides = [1, 1]} : vector<8x256xf32> to vector<4x256xf32>
    %8 = vector.extract_strided_slice %6 {offsets = [4, 0], sizes = [4, 256], strides = [1, 1]} : vector<8x256xf32> to vector<4x256xf32>
    %c0_5 = arith.constant 0 : index
    %c0_6 = arith.constant 0 : index
    %c0_7 = arith.constant 0 : index
    %9 = vector.load %arg5[%c0_5, %c0_6, %c0_7] : memref<1x8x4xf32, #tpu.memory_space<vmem>>, vector<1x8x4xf32>
    %10 = vector.shape_cast %9 : vector<1x8x4xf32> to vector<8x4xf32>
    %cst_8 = arith.constant dense<0.000000e+00> : vector<8x256xf32>
    %11 = tpu.matmul %10, %7, %cst_8 {dimension_numbers = #tpu.dot_dimension_numbers<[1], [0], [0], [1], [0, 0, 1, 1], [], []>} : vector<8x4xf32>, vector<4x256xf32>, vector<8x256xf32> -> vector<8x256xf32>
    %c0_9 = arith.constant 0 : index
    %c0_10 = arith.constant 0 : index
    %c0_11 = arith.constant 0 : index
    %12 = vector.load %arg2[%c0_9, %c0_10, %c0_11] : memref<2x8x16xf32, #tpu.memory_space<vmem>>, vector<1x8x16xf32>
    %13 = vector.shape_cast %12 : vector<1x8x16xf32> to vector<8x16xf32>
    %c0_12 = arith.constant 0 : index
    %c0_13 = arith.constant 0 : index
    %c0_14 = arith.constant 0 : index
    %14 = vector.load %arg6[%c0_12, %c0_13, %c0_14] : memref<1x16x8xf32, #tpu.memory_space<vmem>>, vector<1x16x8xf32>
    %15 = vector.shape_cast %14 : vector<1x16x8xf32> to vector<16x8xf32>
    %cst_15 = arith.constant dense<0.000000e+00> : vector<8x8xf32>
    %16 = tpu.matmul %13, %15, %cst_15 {dimension_numbers = #tpu.dot_dimension_numbers<[1], [0], [0], [1], [0, 0, 1, 1], [], []>} : vector<8x16xf32>, vector<16x8xf32>, vector<8x8xf32> -> vector<8x8xf32>
    %c0_16 = arith.constant 0 : index
    %c0_17 = arith.constant 0 : index
    %c0_18 = arith.constant 0 : index
    %17 = vector.load %arg7[%c0_16, %c0_17, %c0_18] : memref<1x8x16xf32, #tpu.memory_space<vmem>>, vector<1x8x16xf32>
    %18 = vector.shape_cast %17 : vector<1x8x16xf32> to vector<8x16xf32>
    %c0_19 = arith.constant 0 : index
    %c0_20 = arith.constant 0 : index
    %c0_21 = arith.constant 0 : index
    %19 = vector.load %arg3[%c0_19, %c0_20, %c0_21] : memref<2x16x8xf32, #tpu.memory_space<vmem>>, vector<1x16x8xf32>
    %20 = vector.shape_cast %19 : vector<1x16x8xf32> to vector<16x8xf32>
    %cst_22 = arith.constant dense<0.000000e+00> : vector<8x8xf32>
    %21 = tpu.matmul %18, %20, %cst_22 {dimension_numbers = #tpu.dot_dimension_numbers<[1], [0], [0], [1], [0, 0, 1, 1], [], []>} : vector<8x16xf32>, vector<16x8xf32>, vector<8x8xf32> -> vector<8x8xf32>
    %22 = vector.extract_strided_slice %11 {offsets = [0, 0], sizes = [8, 128], strides = [1, 1]} : vector<8x256xf32> to vector<8x128xf32>
    %cst_23 = arith.constant dense<0.000000e+00> : vector<8x128xf32>
    %23 = tpu.matmul %16, %22, %cst_23 {dimension_numbers = #tpu.dot_dimension_numbers<[1], [0], [0], [1], [0, 0, 1, 1], [], []>} : vector<8x8xf32>, vector<8x128xf32>, vector<8x128xf32> -> vector<8x128xf32>
    %cst_24 = arith.constant 0.353553385 : f32
    %24 = vector.broadcast %cst_24 : f32 to vector<8x128xf32>
    %25 = arith.mulf %23, %24 : vector<8x128xf32>
    %cst_25 = arith.constant dense<0xFF800000> : vector<128xf32>
    %26 = vector.multi_reduction <maximumf>, %25, %cst_25 [0] : vector<8x128xf32> to vector<128xf32>
    %27 = vector.shape_cast %26 : vector<128xf32> to vector<1x128xf32>
    %28 = vector.broadcast %27 : vector<1x128xf32> to vector<8x128xf32>
    %29 = arith.subf %25, %28 : vector<8x128xf32>
    %30 = math.exp %29 : vector<8x128xf32>
    %cst_26 = arith.constant dense<0.000000e+00> : vector<128xf32>
    %31 = vector.multi_reduction <add>, %30, %cst_26 [0] : vector<8x128xf32> to vector<128xf32>
    %32 = vector.shape_cast %31 : vector<128xf32> to vector<1x128xf32>
    %33 = tpu.reciprocal %32 {approx = true} : vector<1x128xf32> -> vector<1x128xf32>
    %34 = vector.broadcast %33 : vector<1x128xf32> to vector<8x128xf32>
    %35 = arith.mulf %30, %34 : vector<8x128xf32>
    %cst_27 = arith.constant dense<0.000000e+00> : vector<8x128xf32>
    %36 = tpu.matmul %21, %35, %cst_27 {dimension_numbers = #tpu.dot_dimension_numbers<[1], [0], [0], [1], [0, 0, 1, 1], [], []>} : vector<8x8xf32>, vector<8x128xf32>, vector<8x128xf32> -> vector<8x128xf32>
    %c0_28 = arith.constant 0 : index
    %c0_29 = arith.constant 0 : index
    %c0_30 = arith.constant 0 : index
    %37 = vector.load %arg8[%c0_28, %c0_29, %c0_30] : memref<1x4x8xf32, #tpu.memory_space<vmem>>, vector<1x4x8xf32>
    %38 = vector.shape_cast %37 : vector<1x4x8xf32> to vector<4x8xf32>
    %cst_31 = arith.constant dense<0.000000e+00> : vector<4x128xf32>
    %39 = tpu.matmul %38, %36, %cst_31 {dimension_numbers = #tpu.dot_dimension_numbers<[1], [0], [0], [1], [0, 0, 1, 1], [], []>} : vector<4x8xf32>, vector<8x128xf32>, vector<4x128xf32> -> vector<4x128xf32>
    %c0_32 = arith.constant 0 : index
    %c0_33 = arith.constant 0 : index
    %c0_34 = arith.constant 0 : index
    %40 = vector.load %arg9[%c0_32, %c0_33, %c0_34] : memref<1x4x8xf32, #tpu.memory_space<vmem>>, vector<1x4x8xf32>
    %41 = vector.shape_cast %40 : vector<1x4x8xf32> to vector<4x8xf32>
    %cst_35 = arith.constant dense<0.000000e+00> : vector<4x128xf32>
    %42 = tpu.matmul %41, %36, %cst_35 {dimension_numbers = #tpu.dot_dimension_numbers<[1], [0], [0], [1], [0, 0, 1, 1], [], []>} : vector<4x8xf32>, vector<8x128xf32>, vector<4x128xf32> -> vector<4x128xf32>
    %43 = vector.extract_strided_slice %8 {offsets = [0, 0], sizes = [4, 128], strides = [1, 1]} : vector<4x256xf32> to vector<4x128xf32>
    %44 = math.exp %42 : vector<4x128xf32>
    %45 = arith.mulf %44, %43 : vector<4x128xf32>
    %46 = arith.addf %45, %39 : vector<4x128xf32>
    %c0_36 = arith.constant 0 : index
    %c0_37 = arith.constant 0 : index
    %c0_38 = arith.constant 0 : index
    %c0_39 = arith.constant 0 : index
    %47 = vector.load %arg12[%c0_36, %c0_37, %c0_38, %c0_39] : memref<1x2x8x128xf32, #tpu.memory_space<vmem>>, vector<1x1x8x128xf32>
    %48 = vector.shape_cast %47 : vector<1x1x8x128xf32> to vector<8x128xf32>
    %49 = vector.shape_cast %35 : vector<8x128xf32> to vector<1x1x8x128xf32>
    tpu.vector_store %arg12[%c0_36, %c0_37, %c0_38, %c0_39], %49 {strides = array<i32>} : memref<1x2x8x128xf32, #tpu.memory_space<vmem>>, vector<1x1x8x128xf32>,
    %c1 = arith.constant 1 : index
    %c0_40 = arith.constant 0 : index
    %c0_41 = arith.constant 0 : index
    %50 = vector.load %arg2[%c1, %c0_40, %c0_41] : memref<2x8x16xf32, #tpu.memory_space<vmem>>, vector<1x8x16xf32>
    %51 = vector.shape_cast %50 : vector<1x8x16xf32> to vector<8x16xf32>
    %c0_42 = arith.constant 0 : index
    %c0_43 = arith.constant 0 : index
    %c0_44 = arith.constant 0 : index
    %52 = vector.load %arg6[%c0_42, %c0_43, %c0_44] : memref<1x16x8xf32, #tpu.memory_space<vmem>>, vector<1x16x8xf32>
    %53 = vector.shape_cast %52 : vector<1x16x8xf32> to vector<16x8xf32>
    %cst_45 = arith.constant dense<0.000000e+00> : vector<8x8xf32>
    %54 = tpu.matmul %51, %53, %cst_45 {dimension_numbers = #tpu.dot_dimension_numbers<[1], [0], [0], [1], [0, 0, 1, 1], [], []>} : vector<8x16xf32>, vector<16x8xf32>, vector<8x8xf32> -> vector<8x8xf32>
    %c0_46 = arith.constant 0 : index
    %c0_47 = arith.constant 0 : index
    %c0_48 = arith.constant 0 : index
    %55 = vector.load %arg7[%c0_46, %c0_47, %c0_48] : memref<1x8x16xf32, #tpu.memory_space<vmem>>, vector<1x8x16xf32>
    %56 = vector.shape_cast %55 : vector<1x8x16xf32> to vector<8x16xf32>
    %c1_49 = arith.constant 1 : index
    %c0_50 = arith.constant 0 : index
    %c0_51 = arith.constant 0 : index
    %57 = vector.load %arg3[%c1_49, %c0_50, %c0_51] : memref<2x16x8xf32, #tpu.memory_space<vmem>>, vector<1x16x8xf32>
    %58 = vector.shape_cast %57 : vector<1x16x8xf32> to vector<16x8xf32>
    %cst_52 = arith.constant dense<0.000000e+00> : vector<8x8xf32>
    %59 = tpu.matmul %56, %58, %cst_52 {dimension_numbers = #tpu.dot_dimension_numbers<[1], [0], [0], [1], [0, 0, 1, 1], [], []>} : vector<8x16xf32>, vector<16x8xf32>, vector<8x8xf32> -> vector<8x8xf32>
    %60 = vector.extract_strided_slice %11 {offsets = [0, 128], sizes = [8, 128], strides = [1, 1]} : vector<8x256xf32> to vector<8x128xf32>
    %cst_53 = arith.constant dense<0.000000e+00> : vector<8x128xf32>
    %61 = tpu.matmul %54, %60, %cst_53 {dimension_numbers = #tpu.dot_dimension_numbers<[1], [0], [0], [1], [0, 0, 1, 1], [], []>} : vector<8x8xf32>, vector<8x128xf32>, vector<8x128xf32> -> vector<8x128xf32>
    %cst_54 = arith.constant 0.353553385 : f32
    %62 = vector.broadcast %cst_54 : f32 to vector<8x128xf32>
    %63 = arith.mulf %61, %62 : vector<8x128xf32>
    %cst_55 = arith.constant dense<0xFF800000> : vector<128xf32>
    %64 = vector.multi_reduction <maximumf>, %63, %cst_55 [0] : vector<8x128xf32> to vector<128xf32>
    %65 = vector.shape_cast %64 : vector<128xf32> to vector<1x128xf32>
    %66 = vector.broadcast %65 : vector<1x128xf32> to vector<8x128xf32>
    %67 = arith.subf %63, %66 : vector<8x128xf32>
    %68 = math.exp %67 : vector<8x128xf32>
    %cst_56 = arith.constant dense<0.000000e+00> : vector<128xf32>
    %69 = vector.multi_reduction <add>, %68, %cst_56 [0] : vector<8x128xf32> to vector<128xf32>
    %70 = vector.shape_cast %69 : vector<128xf32> to vector<1x128xf32>
    %71 = tpu.reciprocal %70 {approx = true} : vector<1x128xf32> -> vector<1x128xf32>
    %72 = vector.broadcast %71 : vector<1x128xf32> to vector<8x128xf32>
    %73 = arith.mulf %68, %72 : vector<8x128xf32>
    %cst_57 = arith.constant dense<0.000000e+00> : vector<8x128xf32>
    %74 = tpu.matmul %59, %73, %cst_57 {dimension_numbers = #tpu.dot_dimension_numbers<[1], [0], [0], [1], [0, 0, 1, 1], [], []>} : vector<8x8xf32>, vector<8x128xf32>, vector<8x128xf32> -> vector<8x128xf32>
    %c0_58 = arith.constant 0 : index
    %c0_59 = arith.constant 0 : index
    %c0_60 = arith.constant 0 : index
    %75 = vector.load %arg8[%c0_58, %c0_59, %c0_60] : memref<1x4x8xf32, #tpu.memory_space<vmem>>, vector<1x4x8xf32>
    %76 = vector.shape_cast %75 : vector<1x4x8xf32> to vector<4x8xf32>
    %cst_61 = arith.constant dense<0.000000e+00> : vector<4x128xf32>
    %77 = tpu.matmul %76, %74, %cst_61 {dimension_numbers = #tpu.dot_dimension_numbers<[1], [0], [0], [1], [0, 0, 1, 1], [], []>} : vector<4x8xf32>, vector<8x128xf32>, vector<4x128xf32> -> vector<4x128xf32>
    %c0_62 = arith.constant 0 : index
    %c0_63 = arith.constant 0 : index
    %c0_64 = arith.constant 0 : index
    %78 = vector.load %arg9[%c0_62, %c0_63, %c0_64] : memref<1x4x8xf32, #tpu.memory_space<vmem>>, vector<1x4x8xf32>
    %79 = vector.shape_cast %78 : vector<1x4x8xf32> to vector<4x8xf32>
    %cst_65 = arith.constant dense<0.000000e+00> : vector<4x128xf32>
    %80 = tpu.matmul %79, %74, %cst_65 {dimension_numbers = #tpu.dot_dimension_numbers<[1], [0], [0], [1], [0, 0, 1, 1], [], []>} : vector<4x8xf32>, vector<8x128xf32>, vector<4x128xf32> -> vector<4x128xf32>
    %81 = vector.extract_strided_slice %8 {offsets = [0, 128], sizes = [4, 128], strides = [1, 1]} : vector<4x256xf32> to vector<4x128xf32>
    %82 = math.exp %80 : vector<4x128xf32>
    %83 = arith.mulf %82, %81 : vector<4x128xf32>
    %84 = arith.addf %83, %77 : vector<4x128xf32>
    %c0_66 = arith.constant 0 : index
    %c1_67 = arith.constant 1 : index
    %c0_68 = arith.constant 0 : index
    %c0_69 = arith.constant 0 : index
    %85 = vector.load %arg12[%c0_66, %c1_67, %c0_68, %c0_69] : memref<1x2x8x128xf32, #tpu.memory_space<vmem>>, vector<1x1x8x128xf32>
    %86 = vector.shape_cast %85 : vector<1x1x8x128xf32> to vector<8x128xf32>
    %87 = vector.shape_cast %73 : vector<8x128xf32> to vector<1x1x8x128xf32>
    tpu.vector_store %arg12[%c0_66, %c1_67, %c0_68, %c0_69], %87 {strides = array<i32>} : memref<1x2x8x128xf32, #tpu.memory_space<vmem>>, vector<1x1x8x128xf32>,
    %c0_70 = arith.constant 0 : index
    %c0_71 = arith.constant 0 : index
    %88 = vector.load %arg13[%c0_70, %c0_71] : memref<8x256xf32, #tpu.memory_space<vmem>>, vector<4x256xf32>
    tpu.vector_store %arg13[%c0_70, %c0_71], %7 {strides = array<i32>} : memref<8x256xf32, #tpu.memory_space<vmem>>, vector<4x256xf32>,
    %89 = tpu.concatenate %46, %84 in 1 : vector<4x128xf32>, vector<4x128xf32> -> vector<4x256xf32>
    %c4 = arith.constant 4 : index
    %c0_72 = arith.constant 0 : index
    %90 = vector.load %arg13[%c4, %c0_72] : memref<8x256xf32, #tpu.memory_space<vmem>>, vector<4x256xf32>
    tpu.vector_store %arg13[%c4, %c0_72], %89 {strides = array<i32>} : memref<8x256xf32, #tpu.memory_space<vmem>>, vector<4x256xf32>,
    %91 = tpu.concatenate %42, %80 in 1 : vector<4x128xf32>, vector<4x128xf32> -> vector<4x256xf32>
    %c0_73 = arith.constant 0 : index
    %c0_74 = arith.constant 0 : index
    %c0_75 = arith.constant 0 : index
    %92 = vector.load %arg11[%c0_73, %c0_74, %c0_75] : memref<1x4x256xf32, #tpu.memory_space<vmem>>, vector<1x4x256xf32>
    %93 = vector.shape_cast %92 : vector<1x4x256xf32> to vector<4x256xf32>
    %94 = vector.shape_cast %91 : vector<4x256xf32> to vector<1x4x256xf32>
    tpu.vector_store %arg11[%c0_73, %c0_74, %c0_75], %94 {strides = array<i32>} : memref<1x4x256xf32, #tpu.memory_space<vmem>>, vector<1x4x256xf32>,
    %c1_i32 = arith.constant 1 : i32
    %95 = arith.cmpi eq, %arg0, %c1_i32 : i32
    %96 = arith.extui %95 : i1 to i32
    %c0_i32_76 = arith.constant 0 : i32
    %97 = arith.cmpi ne, %96, %c0_i32_76 : i32
    scf.if %97 {
      %c0_77 = arith.constant 0 : index
      %c0_78 = arith.constant 0 : index
      %98 = vector.load %arg13[%c0_77, %c0_78] : memref<8x256xf32, #tpu.memory_space<vmem>>, vector<8x256xf32>
      %c0_79 = arith.constant 0 : index
      %c0_80 = arith.constant 0 : index
      %99 = vector.load %arg10[%c0_79, %c0_80] : memref<8x256xf32, #tpu.memory_space<vmem>>, vector<8x256xf32>
      tpu.vector_store %arg10[%c0_79, %c0_80], %98 {strides = array<i32>} : memref<8x256xf32, #tpu.memory_space<vmem>>, vector<8x256xf32>,
    } else {
    }
    return
  }
  func.func @transform_0(%arg0: i32) -> (i32, i32) {
    %c0_i32 = arith.constant 0 : i32
    %c0_i32_0 = arith.constant 0 : i32
    %c0_i32_1 = arith.constant 0 : i32
    return %c0_i32, %c0_i32_0 : i32, i32
  }
  func.func @transform_1(%arg0: i32) -> (i32, i32, i32) {
    %c0_i32 = arith.constant 0 : i32
    %c0_i32_0 = arith.constant 0 : i32
    %c0_i32_1 = arith.constant 0 : i32
    %c0_i32_2 = arith.constant 0 : i32
    return %c0_i32, %c0_i32_0, %c0_i32_1 : i32, i32, i32
  }
  func.func @transform_2(%arg0: i32) -> (i32, i32, i32) {
    %c0_i32 = arith.constant 0 : i32
    %c0_i32_0 = arith.constant 0 : i32
    %c0_i32_1 = arith.constant 0 : i32
    %c0_i32_2 = arith.constant 0 : i32
    return %c0_i32, %c0_i32_0, %c0_i32_1 : i32, i32, i32
  }
  func.func @transform_3(%arg0: i32) -> (i32, i32, i32) {
    %c0_i32 = arith.constant 0 : i32
    %c0_i32_0 = arith.constant 0 : i32
    %c0_i32_1 = arith.constant 0 : i32
    return %arg0, %c0_i32, %c0_i32_0 : i32, i32, i32
  }
  func.func @transform_4(%arg0: i32) -> (i32, i32, i32) {
    %c0_i32 = arith.constant 0 : i32
    %c0_i32_0 = arith.constant 0 : i32
    %c0_i32_1 = arith.constant 0 : i32
    return %arg0, %c0_i32, %c0_i32_0 : i32, i32, i32
  }
  func.func @transform_5(%arg0: i32) -> (i32, i32, i32) {
    %c0_i32 = arith.constant 0 : i32
    %c0_i32_0 = arith.constant 0 : i32
    %c0_i32_1 = arith.constant 0 : i32
    return %arg0, %c0_i32, %c0_i32_0 : i32, i32, i32
  }
  func.func @transform_6(%arg0: i32) -> (i32, i32, i32) {
    %c0_i32 = arith.constant 0 : i32
    %c0_i32_0 = arith.constant 0 : i32
    %c0_i32_1 = arith.constant 0 : i32
    return %arg0, %c0_i32, %c0_i32_0 : i32, i32, i32
  }
  func.func @transform_7(%arg0: i32) -> (i32, i32, i32) {
    %c0_i32 = arith.constant 0 : i32
    %c0_i32_0 = arith.constant 0 : i32
    %c0_i32_1 = arith.constant 0 : i32
    return %arg0, %c0_i32, %c0_i32_0 : i32, i32, i32
  }
  func.func @transform_8(%arg0: i32) -> (i32, i32, i32) {
    %c0_i32 = arith.constant 0 : i32
    %c0_i32_0 = arith.constant 0 : i32
    %c0_i32_1 = arith.constant 0 : i32
    return %arg0, %c0_i32, %c0_i32_0 : i32, i32, i32
  }
  func.func @transform_9(%arg0: i32) -> (i32, i32) {
    %c0_i32 = arith.constant 0 : i32
    %c0_i32_0 = arith.constant 0 : i32
    %c0_i32_1 = arith.constant 0 : i32
    return %c0_i32, %c0_i32_0 : i32, i32
  }
  func.func @transform_10(%arg0: i32) -> (i32, i32, i32) {
    %c0_i32 = arith.constant 0 : i32
    %c0_i32_0 = arith.constant 0 : i32
    %c0_i32_1 = arith.constant 0 : i32
    return %arg0, %c0_i32, %c0_i32_0 : i32, i32, i32
  }
  func.func @transform_11(%arg0: i32) -> (i32, i32, i32, i32) {
    %c0_i32 = arith.constant 0 : i32
    %c0_i32_0 = arith.constant 0 : i32
    %c0_i32_1 = arith.constant 0 : i32
    %c0_i32_2 = arith.constant 0 : i32
    return %arg0, %c0_i32, %c0_i32_0, %c0_i32_1 : i32, i32, i32, i32
  }
}

</mosaic_0001>

<llo_original>
// kernel: custom-call.2
$region0: #{custom-call.2}
  %s0 = inlined_call_operand.vmem [shape: f32[2,8,8], index: 0, kind: input, shape index: {}]
  %s1 = inlined_call_operand.vmem [shape: f32[2,8,8], index: 1, kind: output, shape index: {0}]
  %s2 = inlined_call_operand.vmem [shape: s32[2,8], index: 2, kind: output, shape index: {1}]
  %s3 = inlined_call_operand.hbm [shape: s32[2,8], index: 3, kind: output, shape index: {2}]
  %4 = xla_tuple %s1, %s2, %s3
  $region1: #{custom-call.2} parent=0
    #allocation0 [shape = 'u8[8192]{0}', space=vmem, size = 0x2000, scoped, tag = 'operand span for operand 0']
    #allocation1 [shape = 'u8[8192]{0}', space=vmem, size = 0x2000, scoped, tag = 'operand span for operand 1']
    #allocation2 [shape = 'u8[4096]{0}', space=vmem, size = 0x1000, scoped, tag = 'operand span for operand 2']
    #allocation3 [shape = 'u8[2048]{0}', space=vmem, size = 0x800, scoped, tag = 'packed  for operand 2']
    #allocation4 [shape = 'u8[4096]{0}', space=vmem, size = 0x1000, scoped, tag = 'operand span for operand 3']
    #allocation5 [shape = 'u8[2048]{0}', space=vmem, size = 0x800, scoped, tag = 'packed  for operand 3']
    #allocation6 [shape = 's32[2]{0}', space=sflag, size = 0x8, scoped, tag = 'scoped memory for custom-call.2']
    %5 = vsyncpa [#allocation6], 0
    %s6 = scalar_lea.sflag [#allocation6], 1
    %7 = vsyncpa %s6, 0
    loop: start=0, step=1, limit=4
    $region2: #{custom-call.2} parent=1 // loop_pre_header
      _
    $region3: #{custom-call.2} parent=1 // loop_header
      %s9 = sphi 0, %s13
      %p10 = scmp.ge.s32.totalorder %s9, 4
      %s21 = sphi 0, %s23
      %s24 = sphi 0, %s21
      %s25 = sphi 0, %s24
      %s41 = sphi 0, %s25
      %s49 = sphi 0, %s51
      %s52 = sphi 0, %s49
      %s53 = sphi 0, %s52
      %s69 = sphi 0, %s53
    $region4: #{custom-call.2} parent=1 // loop_header_branch
      %12 = sbr.rel (%p10) target = $region8
    $region5: #{custom-call.2} parent=1 // loop_body
      %s14 = ssub.s32 %s9, 1
      %s15 = ssub.s32 %s9, 2
      %s16 = sadd.s32 %s9, 1
      %s17 = sshrl.u32 %s9, 3
      %s18 = sshrl.u32 %s16, 3
      %s19 = ssub.s32 %s17, %s18
      %p20 = scmp.eq.s32.totalorder %s19, 0
      %s22 = sadd.s32 %s21, 1
      %s23 = scalar_select %p20, %s21, %s22
      %p26 = pneg %p20
      %p27 = scmp.eq.s32.totalorder %s9, 1
      %p28 = por %p26, %p27
      %p29 = scmp.ne.s32.totalorder %s21, %s24
      %p30 = scmp.eq.s32.totalorder %s9, 0
      %p31 = por %p29, %p30
      %p32 = scmp.ne.s32.totalorder %s21, %s24
      %p33 = scmp.eq.s32.totalorder %s14, 1
      %p34 = por %p32, %p33
      %p35 = scmp.ne.s32.totalorder %s24, %s25
      %p36 = scmp.eq.s32.totalorder %s14, 0
      %p37 = por %p35, %p36
      %p38 = scmp.ne.s32.totalorder %s24, %s25
      %p39 = scmp.eq.s32.totalorder %s15, 1
      %p40 = por %p38, %p39
      %p42 = scmp.ne.s32.totalorder %s25, %s41
      %p43 = scmp.eq.s32.totalorder %s15, 0
      %p44 = por %p42, %p43
      %s45 = sshrl.u32 %s9, 3
      %s46 = sshrl.u32 %s16, 3
      %s47 = ssub.s32 %s45, %s46
      %p48 = scmp.eq.s32.totalorder %s47, 0
      %s50 = sadd.s32 %s49, 1
      %s51 = scalar_select %p48, %s49, %s50
      %p54 = pneg %p48
      %p55 = scmp.eq.s32.totalorder %s9, 1
      %p56 = por %p54, %p55
      %p57 = scmp.ne.s32.totalorder %s49, %s52
      %p58 = scmp.eq.s32.totalorder %s9, 0
      %p59 = por %p57, %p58
      %p60 = scmp.ne.s32.totalorder %s49, %s52
      %p61 = scmp.eq.s32.totalorder %s14, 1
      %p62 = por %p60, %p61
      %p63 = scmp.ne.s32.totalorder %s52, %s53
      %p64 = scmp.eq.s32.totalorder %s14, 0
      %p65 = por %p63, %p64
      %p66 = scmp.ne.s32.totalorder %s52, %s53
      %p67 = scmp.eq.s32.totalorder %s15, 1
      %p68 = por %p66, %p67
      %p70 = scmp.ne.s32.totalorder %s53, %s69
      %p71 = scmp.eq.s32.totalorder %s15, 0
      %p72 = por %p70, %p71
      %p73 = scmp.le.s32.totalorder 1, %s9
      %p74 = scmp.lt.s32.totalorder %s9, 3
      %p75 = pnand %p73, %p74
      %p76 = pneg %p75
      // Predicated region
      $region9: #{custom-call.2} parent=5 // pred_check
        _
      $region10: #{custom-call.2} parent=5 // pred_check_branch
        %78 = sbr.rel (%p75) target = $region12
      $region11: #{custom-call.2} parent=5 // pred_region
        %s79 = ssub.s32 %s9, 1
      $region12: #{custom-call.2} parent=5 // pred_fallthru
        _
      %p80 = scmp.lt.s32.totalorder %s9, 2
      // Predicated region
      $region13: #{custom-call.2} parent=5 // pred_check
        %p81 = pneg %p80
      $region14: #{custom-call.2} parent=5 // pred_check_branch
        %83 = sbr.rel (%p81) target = $region16
      $region15: #{custom-call.2} parent=5 // pred_region
        %s84 = sand.u32 %s9, 1
        %s85 = sand.u32 %s9, 1
        %s86 = smul.addr %s85, 8
        %s87 = scalar_lea.vmem [#allocation0], %s86
        %s88 = smul.addr %s9, 8
        %s89 = scalar_lea.vmem %s0, %s88
        // Predicated region
        $region17: #{custom-call.2} parent=15 // pred_check
          _
        $region18: #{custom-call.2} parent=15 // pred_check_branch
          %91 = sbr.rel (0) target = $region20
        $region19: #{custom-call.2} parent=15 // pred_region
          // Predicated region
          $region21: #{custom-call.2} parent=19 // pred_check
            _
          $region22: #{custom-call.2} parent=19 // pred_check_branch
            %93 = sbr.rel (0) target = $region24
          $region23: #{custom-call.2} parent=19 // pred_region
            // Predicated region
            $region36: #{custom-call.2} parent=23 // pred_check
              _
            $region37: #{custom-call.2} parent=23 // pred_check_branch
              %109 = sbr.rel (0) target = $region39
            $region38: #{custom-call.2} parent=23 // pred_region
              loop: start=0, step=1, limit=1
              $region40: #{custom-call.2} parent=38 // loop_pre_header
                _
              $region41: #{custom-call.2} parent=38 // loop_header
                %s111 = sphi 0, %s115
                %p112 = scmp.ge.s32.totalorder %s111, 1
                %s116 = sphi %s89, %s89
                %s117 = sphi %s87, %s87
              $region42: #{custom-call.2} parent=38 // loop_header_branch
                %114 = sbr.rel (%p112) target = $region46
              $region43: #{custom-call.2} parent=38 // loop_body
                %v118 = vld [vmem:[%s116] sm:$0xff]
                %119 = vst [vmem:[%s117] sm:$0xff] %v118
              $region44: #{custom-call.2} parent=38 // loop_footer
                %s115 = sadd.s32 1, %s111
              $region45: #{custom-call.2} parent=38 // loop_footer_branch
                %110 = sbr.rel target = $region41
              $region46: #{custom-call.2} parent=38 // loop_exit
                _
            $region39: #{custom-call.2} parent=23 // pred_fallthru
              _
            // Predicated region
            $region47: #{custom-call.2} parent=23 // pred_check
              _
            $region48: #{custom-call.2} parent=23 // pred_check_branch
              %121 = sbr.rel target = $region50
            $region49: #{custom-call.2} parent=23 // pred_region
              _
            $region50: #{custom-call.2} parent=23 // pred_fallthru
              _
          $region24: #{custom-call.2} parent=19 // pred_fallthru
            _
          // Predicated region
          $region25: #{custom-call.2} parent=19 // pred_check
            _
          $region26: #{custom-call.2} parent=19 // pred_check_branch
            %95 = sbr.rel target = $region28
          $region27: #{custom-call.2} parent=19 // pred_region
            %s97 = ssub.s32 256, 1
            loop: start=0, step=1, limit=1
            $region29: #{custom-call.2} parent=27 // loop_pre_header
              _
            $region30: #{custom-call.2} parent=27 // loop_header
              %s99 = sphi 0, %s103
              %p100 = scmp.ge.s32.totalorder %s99, 1
              %s104 = sphi %s89, %s89
              %s105 = sphi %s87, %s87
            $region31: #{custom-call.2} parent=27 // loop_header_branch
              %102 = sbr.rel (%p100) target = $region35
            $region32: #{custom-call.2} parent=27 // loop_body
              %v106 = vld [vmem:[%s104] sm:%s97]
              %107 = vst [vmem:[%s105] sm:%s97] %v106
            $region33: #{custom-call.2} parent=27 // loop_footer
              %s103 = sadd.s32 1, %s99
            $region34: #{custom-call.2} parent=27 // loop_footer_branch
              %98 = sbr.rel target = $region30
            $region35: #{custom-call.2} parent=27 // loop_exit
              _
          $region28: #{custom-call.2} parent=19 // pred_fallthru
            _
        $region20: #{custom-call.2} parent=15 // pred_fallthru
          _
        %122 = vnop
      $region16: #{custom-call.2} parent=5 // pred_fallthru
        _
      %p123 = scmp.le.s32.totalorder 1, %s9
      %p124 = scmp.lt.s32.totalorder %s9, 3
      %p125 = pnand %p123, %p124
      %p126 = pneg %p125
      // Predicated region
      $region51: #{custom-call.2} parent=5 // pred_check
        _
      $region52: #{custom-call.2} parent=5 // pred_check_branch
        %128 = sbr.rel (%p125) target = $region54
      $region53: #{custom-call.2} parent=5 // pred_region
        #allocation7 [shape = 's32[8,128]{1,0}', space=vmem, size = 0x1000, scoped, tag = 'scratch for permutations']
        %s129 = ssub.s32 %s9, 1
        %s130 = sand.u32 %s14, 1
        %s131 = sand.u32 %s14, 1
        %s132 = smul.addr %s131, 8
        %s133 = scalar_lea.vmem [#allocation0], %s132
        %s134 = sand.u32 %s14, 1
        %s135 = sand.u32 %s14, 1
        %s136 = smul.addr %s135, 8
        %s137 = scalar_lea.vmem [#allocation0], %s136
        %s138 = sand.u32 %s14, 1
        %s139 = sand.u32 %s14, 1
        %s140 = smul.addr %s139, 8
        %s141 = scalar_lea.vmem [#allocation1], %s140
        %p142 = pneg %p37
        %p143 = pneg %p34
        %s144 = sand.u32 %s24, 1
        %s145 = sand.u32 %s24, 1
        %s146 = smul.addr %s145, 2
        %s147 = scalar_lea.vmem [#allocation3], %s146
        %p148 = pneg %p65
        %p149 = pneg %p62
        %s150 = sand.u32 %s52, 1
        %s151 = scalar_lea.sflag [#allocation6], %s150
        %s152 = sand.u32 %s52, 1
        %s153 = smul.addr %s152, 2
        %s154 = scalar_lea.vmem [#allocation5], %s153
        %s155 = sshrl.u32 %s14, 3
        %s156 = sshrl.u32 %s14, 3
        %v157 = vld [vmem:[%s133] sm:$0xff]
        %158 = vst [vmem:[%s141] sm:$0xff] %v157
        %s159 = sand.u32 %s14, 7
        %s160 = scalar_lea.vmem [#allocation2], %s159
        %s161 = sand.u32 %s14, 7
        %s162 = scalar_lea.vmem [#allocation4], %s161
        %163 = vst [vmem:[%s160] sm:$0x1] 0
        %v164 = vlaneseq
        %v165 = vshrl.u32 %v164, 7
        %v166 = vmov %v165
        %168 = vst [vmem:[#allocation7] sm:$0xff] %v166
        loop: start=0, step=1, limit=8
        $region56: #{custom-call.2} parent=53 // loop_pre_header
          _
        $region57: #{custom-call.2} parent=53 // loop_header
          %s170 = sphi 0, %s174
          %p171 = scmp.ge.s32.totalorder %s170, 8
        $region58: #{custom-call.2} parent=53 // loop_header_branch
          %173 = sbr.rel (%p171) target = $region62
        $region59: #{custom-call.2} parent=53 // loop_body
          %v175 = vstv %s170
          %v176 = vlaneseq
          %v177 = vshrl.u32 %v176, 7
          %v178 = vmov %v177
          %v179 = vld [vmem:[%s141] sm:$0xff]
          %v180 = vand.u32 2147483647, %v179
          %v182 = vstv %s170
          %vm183 = vcmp.ge.s32.totalorder %v178, %v182
          %vm184 = vcmp.lt.s32.totalorder %v178, 8
          %vm185 = vmand %vm183, %vm184
          %vm186 = vcmp.lt.f32.partialorder -inf, %v180
          %vm187 = vmand %vm185, %vm186
          %v188 = vsel %vm187, %v178, %v175
          %v189 = vsel %vm187, %v180, -inf
          %v190 = vrot.slane %v189, 1
          %v191 = vrot.slane %v188, 1
          %vm192 = vcmp.ge.f32.partialorder %v190, %v189
          %v193 = vsel %vm192, %v190, %v189
          %v194 = vsel %vm192, %v191, %v188
          %v195 = vrot.slane %v190, 1
          %v196 = vrot.slane %v191, 1
          %vm197 = vcmp.ge.f32.partialorder %v195, %v193
          %v198 = vsel %vm197, %v195, %v193
          %v199 = vsel %vm197, %v196, %v194
          %v200 = vrot.slane %v195, 1
          %v201 = vrot.slane %v196, 1
          %vm202 = vcmp.ge.f32.partialorder %v200, %v198
          %v203 = vsel %vm202, %v200, %v198
          %v204 = vsel %vm202, %v201, %v199
          %v205 = vrot.slane %v200, 1
          %v206 = vrot.slane %v201, 1
          %vm207 = vcmp.ge.f32.partialorder %v205, %v203
          %v208 = vsel %vm207, %v205, %v203
          %v209 = vsel %vm207, %v206, %v204
          %v210 = vrot.slane %v205, 1
          %v211 = vrot.slane %v206, 1
          %vm212 = vcmp.ge.f32.partialorder %v210, %v208
          %v213 = vsel %vm212, %v210, %v208
          %v214 = vsel %vm212, %v211, %v209
          %v215 = vrot.slane %v210, 1
          %v216 = vrot.slane %v211, 1
          %vm217 = vcmp.ge.f32.partialorder %v215, %v213
          %v218 = vsel %vm217, %v215, %v213
          %v219 = vsel %vm217, %v216, %v214
          %v220 = vrot.slane %v215, 1
          %v221 = vrot.slane %v216, 1
          %vm222 = vcmp.ge.f32.partialorder %v220, %v218
          %v223 = vsel %vm222, %v220, %v218
          %v224 = vsel %vm222, %v221, %v219
          %s225 = ssub.s32 128, %s170
          %226 = vrot.lane.b32.xlu0 %v224, %s225
          %v227 = vpop.permute.xlu0 %226
          %s228 = vtos %v227
          %v229 = vstv %s170
          %v230 = vlaneseq
          %v231 = vand.u32 %v230, 127
          %vm232 = vcmp.eq.s32.totalorder %v231, %v229
          %v233 = vstv %s228
          %v234 = vld [vmem:[%s160] ss:$0 sm:$0xff]
          %v235 = vsel %vm232, %v233, %v234
          %236 = vst [vmem:[%s160] sm:$0x1] %v235
          %s237 = scalar_lea.vmem %s141, %s170 [#allocation1]
          %s238 = scalar_lea.vmem %s141, %s228 [#allocation1]
          %v239 = vld [vmem:[%s237] ss:$0 sm:$0xff]
          %v240 = vld [vmem:[%s238] ss:$0 sm:$0xff]
          %241 = vst [vmem:[%s238] sm:$0x1] %v239
          %242 = vst [vmem:[%s237] sm:$0x1] %v240
          %s243 = scalar_lea.vmem [#allocation7], %s170
          %s244 = scalar_lea.vmem [#allocation7], %s228
          %v245 = vld [vmem:[%s243] ss:$0 sm:$0xff]
          %v246 = vld [vmem:[%s244] ss:$0 sm:$0xff]
          %247 = vst [vmem:[%s244] sm:$0x1] %v245
          %248 = vst [vmem:[%s243] sm:$0x1] %v246
          %vm249 = vcmp.ne.f32.partialorder %v240, 0.0
          %vm250 = vmand %vm232, %vm249
          %v251 = vsel %vm250, %v240, 1.0
          %v252 = vlaneseq
          %v253 = vand.u32 %v252, 127
          %v254 = vstv %s170
          %vm255 = vcmp.gt.s32.totalorder %v253, %v254
          %v256 = vsel %vm255, %v240, 0.0
          %v257 = vlaneseq
          %v258 = vshrl.u32 %v257, 7
          %v259 = vmov %v258
          %v260 = vld [vmem:[%s141] sm:$0xff]
          %v262 = vstv %s170
          %vm263 = vcmp.gt.s32.totalorder %v259, %v262
          %v264 = vsel %vm263, %v251, 1.0
          %v265 = vrcp.pop %v264
          %v266 = vmul.f32 %v264, %v265
          %v267 = vsub.f32 1.0, %v266
          %v268 = vmul.f32 %v265, %v267
          %v269 = vadd.f32 %v265, %v268
          %vm270 = vweird.f32 %v264
          %vm271 = vweird.f32 %v265
          %vm272 = vmor %vm270, %vm271
          %v273 = vsel %vm272, %v265, %v269
          %v274 = vand.u32 2147483647, %v264
          %vm275 = vcmp.eq.f32.partialorder %v274, 8.507059e+37
          %v276 = vand.u32 %v264, 2147483648
          %v277 = vor.u32 1.1754944e-38, %v276
          %v278 = vsel %vm275, %v277, %v273
          %v279 = vmul.f32 %v260, %v278
          %vm280 = vmand %vm263, %vm232
          %v281 = vsel %vm280, %v279, 0.0
          %282 = vadd.xlane.f32.xlu0 %v281
          %v283 = vpop.xlane.xlu0 %282
          %v284 = vmul.f32 %v283, %v256
          %v285 = vsub.f32 %v279, %v284
          %286 = vst [vmem:[%s141] sm:$0xff] %v285
        $region60: #{custom-call.2} parent=53 // loop_footer
          %s174 = sadd.s32 1, %s170
        $region61: #{custom-call.2} parent=53 // loop_footer_branch
          %169 = sbr.rel target = $region57
        $region62: #{custom-call.2} parent=53 // loop_exit
          _
        %v287 = vld [vmem:[#allocation7] sm:$0xff]
        %s288 = scalar_lea.vmem [#allocation7], 8
        %s289 = scalar_lea.vmem [#allocation7], 16
        %s290 = scalar_lea.vmem [#allocation7], 24
        %s291 = scalar_lea.vmem [#allocation7], 32
        %s292 = scalar_lea.vmem [#allocation7], 40
        %s293 = scalar_lea.vmem [#allocation7], 48
        %s294 = scalar_lea.vmem [#allocation7], 56
        %s295 = scalar_lea.vmem [#allocation7], 64
        %s296 = scalar_lea.vmem [#allocation7], 72
        %s297 = scalar_lea.vmem [#allocation7], 80
        %s298 = scalar_lea.vmem [#allocation7], 88
        %s299 = scalar_lea.vmem [#allocation7], 96
        %s300 = scalar_lea.vmem [#allocation7], 104
        %s301 = scalar_lea.vmem [#allocation7], 112
        %s302 = scalar_lea.vmem [#allocation7], 120
        %303 = vxpose.xlu0.b32.start [1/16] %v287, 128
        %304 = vxpose.xlu0.b32.cont [2/16] 0, 128
        %305 = vxpose.xlu0.b32.cont [3/16] 0, 128
        %306 = vxpose.xlu0.b32.cont [4/16] 0, 128
        %307 = vxpose.xlu0.b32.cont [5/16] 0, 128
        %308 = vxpose.xlu0.b32.cont [6/16] 0, 128
        %309 = vxpose.xlu0.b32.cont [7/16] 0, 128
        %310 = vxpose.xlu0.b32.cont [8/16] 0, 128
        %311 = vxpose.xlu0.b32.cont [9/16] 0, 128
        %312 = vxpose.xlu0.b32.cont [10/16] 0, 128
        %313 = vxpose.xlu0.b32.cont [11/16] 0, 128
        %314 = vxpose.xlu0.b32.cont [12/16] 0, 128
        %315 = vxpose.xlu0.b32.cont [13/16] 0, 128
        %316 = vxpose.xlu0.b32.cont [14/16] 0, 128
        %317 = vxpose.xlu0.b32.cont [15/16] 0, 128
        %318 = vxpose.xlu0.b32.end [16/16] 0, 128
        %v319 = vpop.trf.xlu0
        %v320 = vpop.trf.xlu0
        %v321 = vpop.trf.xlu0
        %v322 = vpop.trf.xlu0
        %v323 = vpop.trf.xlu0
        %v324 = vpop.trf.xlu0
        %v325 = vpop.trf.xlu0
        %v326 = vpop.trf.xlu0
        %v327 = vpop.trf.xlu0
        %v328 = vpop.trf.xlu0
        %v329 = vpop.trf.xlu0
        %v330 = vpop.trf.xlu0
        %v331 = vpop.trf.xlu0
        %v332 = vpop.trf.xlu0
        %v333 = vpop.trf.xlu0
        %v334 = vpop.trf.xlu0
        %335 = vst [vmem:[%s162] sm:$0x1] %v319
        %s337 = ssub.s32 4, 1
        %v338 = vld [vmem:[#allocation2] sm:%s337]
        %s340 = ssub.s32 4, 1
        %341 = vst [vmem:[%s147] sm:%s340] %v338
        %s343 = ssub.s32 4, 1
        %v344 = vld [vmem:[#allocation4] sm:%s343]
        %s346 = ssub.s32 4, 1
        %347 = vst [vmem:[%s154] sm:%s346] %v344
        %s348 = sand.u32 %s14, 1
        %s349 = sand.u32 %s14, 1
        %s350 = smul.addr %s349, 8
        %s351 = scalar_lea.vmem [#allocation1], %s350
        %s352 = sand.u32 %s24, 1
        %s353 = sand.u32 %s24, 1
        %s354 = smul.addr %s353, 2
        %s355 = scalar_lea.vmem [#allocation3], %s354
        %s356 = sand.u32 %s52, 1
        %s357 = scalar_lea.sflag [#allocation6], %s356
        %s358 = sand.u32 %s52, 1
        %s359 = smul.addr %s358, 2
        %s360 = scalar_lea.vmem [#allocation5], %s359
        %s361 = smul.addr %s14, 8
        %s362 = scalar_lea.vmem %s1, %s361
        // Predicated region
        $region63: #{custom-call.2} parent=53 // pred_check
          _
        $region64: #{custom-call.2} parent=53 // pred_check_branch
          %364 = sbr.rel (0) target = $region66
        $region65: #{custom-call.2} parent=53 // pred_region
          // Predicated region
          $region67: #{custom-call.2} parent=65 // pred_check
            _
          $region68: #{custom-call.2} parent=65 // pred_check_branch
            %366 = sbr.rel (0) target = $region70
          $region69: #{custom-call.2} parent=65 // pred_region
            // Predicated region
            $region82: #{custom-call.2} parent=69 // pred_check
              _
            $region83: #{custom-call.2} parent=69 // pred_check_branch
              %382 = sbr.rel (0) target = $region85
            $region84: #{custom-call.2} parent=69 // pred_region
              loop: start=0, step=1, limit=1
              $region86: #{custom-call.2} parent=84 // loop_pre_header
                _
              $region87: #{custom-call.2} parent=84 // loop_header
                %s384 = sphi 0, %s388
                %p385 = scmp.ge.s32.totalorder %s384, 1
                %s389 = sphi %s351, %s351
                %s390 = sphi %s362, %s362
              $region88: #{custom-call.2} parent=84 // loop_header_branch
                %387 = sbr.rel (%p385) target = $region92
              $region89: #{custom-call.2} parent=84 // loop_body
                %v391 = vld [vmem:[%s389] sm:$0xff]
                %392 = vst [vmem:[%s390] sm:$0xff] %v391
              $region90: #{custom-call.2} parent=84 // loop_footer
                %s388 = sadd.s32 1, %s384
              $region91: #{custom-call.2} parent=84 // loop_footer_branch
                %383 = sbr.rel target = $region87
              $region92: #{custom-call.2} parent=84 // loop_exit
                _
            $region85: #{custom-call.2} parent=69 // pred_fallthru
              _
            // Predicated region
            $region93: #{custom-call.2} parent=69 // pred_check
              _
            $region94: #{custom-call.2} parent=69 // pred_check_branch
              %394 = sbr.rel target = $region96
            $region95: #{custom-call.2} parent=69 // pred_region
              _
            $region96: #{custom-call.2} parent=69 // pred_fallthru
              _
          $region70: #{custom-call.2} parent=65 // pred_fallthru
            _
          // Predicated region
          $region71: #{custom-call.2} parent=65 // pred_check
            _
          $region72: #{custom-call.2} parent=65 // pred_check_branch
            %368 = sbr.rel target = $region74
          $region73: #{custom-call.2} parent=65 // pred_region
            %s370 = ssub.s32 256, 1
            loop: start=0, step=1, limit=1
            $region75: #{custom-call.2} parent=73 // loop_pre_header
              _
            $region76: #{custom-call.2} parent=73 // loop_header
              %s372 = sphi 0, %s376
              %p373 = scmp.ge.s32.totalorder %s372, 1
              %s377 = sphi %s351, %s351
              %s378 = sphi %s362, %s362
            $region77: #{custom-call.2} parent=73 // loop_header_branch
              %375 = sbr.rel (%p373) target = $region81
            $region78: #{custom-call.2} parent=73 // loop_body
              %v379 = vld [vmem:[%s377] sm:%s370]
              %380 = vst [vmem:[%s378] sm:%s370] %v379
            $region79: #{custom-call.2} parent=73 // loop_footer
              %s376 = sadd.s32 1, %s372
            $region80: #{custom-call.2} parent=73 // loop_footer_branch
              %371 = sbr.rel target = $region76
            $region81: #{custom-call.2} parent=73 // loop_exit
              _
          $region74: #{custom-call.2} parent=65 // pred_fallthru
            _
        $region66: #{custom-call.2} parent=53 // pred_fallthru
          _
        %395 = vnop
        // Predicated region
        $region97: #{custom-call.2} parent=53 // pred_check
          %p396 = pneg %p34
        $region98: #{custom-call.2} parent=53 // pred_check_branch
          %398 = sbr.rel (%p396) target = $region100
        $region99: #{custom-call.2} parent=53 // pred_region
          %s399 = sshrl.u32 %s14, 3
          %s400 = smul.addr %s399, 2
          %s401 = scalar_lea.vmem %s2, %s400
          // Predicated region
          $region101: #{custom-call.2} parent=99 // pred_check
            _
          $region102: #{custom-call.2} parent=99 // pred_check_branch
            %403 = sbr.rel (0) target = $region104
          $region103: #{custom-call.2} parent=99 // pred_region
            // Predicated region
            $region105: #{custom-call.2} parent=103 // pred_check
              _
            $region106: #{custom-call.2} parent=103 // pred_check_branch
              %405 = sbr.rel target = $region108
            $region107: #{custom-call.2} parent=103 // pred_region
              // Predicated region
              $region120: #{custom-call.2} parent=107 // pred_check
                _
              $region121: #{custom-call.2} parent=107 // pred_check_branch
                %421 = sbr.rel (0) target = $region123
              $region122: #{custom-call.2} parent=107 // pred_region
                %s423 = ssub.s32 4, 1
                loop: start=0, step=1, limit=1
                $region124: #{custom-call.2} parent=122 // loop_pre_header
                  _
                $region125: #{custom-call.2} parent=122 // loop_header
                  %s425 = sphi 0, %s429
                  %p426 = scmp.ge.s32.totalorder %s425, 1
                  %s430 = sphi %s355, %s355
                  %s431 = sphi %s401, %s401
                $region126: #{custom-call.2} parent=122 // loop_header_branch
                  %428 = sbr.rel (%p426) target = $region130
                $region127: #{custom-call.2} parent=122 // loop_body
                  %v432 = vld [vmem:[%s430] sm:%s423]
                  %433 = vst [vmem:[%s431] sm:%s423] %v432
                $region128: #{custom-call.2} parent=122 // loop_footer
                  %s429 = sadd.s32 1, %s425
                $region129: #{custom-call.2} parent=122 // loop_footer_branch
                  %424 = sbr.rel target = $region125
                $region130: #{custom-call.2} parent=122 // loop_exit
                  _
              $region123: #{custom-call.2} parent=107 // pred_fallthru
                _
            $region108: #{custom-call.2} parent=103 // pred_fallthru
              _
            // Predicated region
            $region109: #{custom-call.2} parent=103 // pred_check
              _
            $region110: #{custom-call.2} parent=103 // pred_check_branch
              %407 = sbr.rel (0) target = $region112
            $region111: #{custom-call.2} parent=103 // pred_region
              %s409 = ssub.s32 4, 1
              loop: start=0, step=1, limit=1
              $region113: #{custom-call.2} parent=111 // loop_pre_header
                _
              $region114: #{custom-call.2} parent=111 // loop_header
                %s411 = sphi 0, %s415
                %p412 = scmp.ge.s32.totalorder %s411, 1
                %s416 = sphi %s355, %s355
                %s417 = sphi %s401, %s401
              $region115: #{custom-call.2} parent=111 // loop_header_branch
                %414 = sbr.rel (%p412) target = $region119
              $region116: #{custom-call.2} parent=111 // loop_body
                %v418 = vld [vmem:[%s416] sm:%s409]
                %419 = vst [vmem:[%s417] sm:%s409] %v418
              $region117: #{custom-call.2} parent=111 // loop_footer
                %s415 = sadd.s32 1, %s411
              $region118: #{custom-call.2} parent=111 // loop_footer_branch
                %410 = sbr.rel target = $region114
              $region119: #{custom-call.2} parent=111 // loop_exit
                _
            $region112: #{custom-call.2} parent=103 // pred_fallthru
              _
          $region104: #{custom-call.2} parent=99 // pred_fallthru
            _
          %434 = vnop
        $region100: #{custom-call.2} parent=53 // pred_fallthru
          _
        // Predicated region
        $region131: #{custom-call.2} parent=53 // pred_check
          %p435 = pneg %p62
        $region132: #{custom-call.2} parent=53 // pred_check_branch
          %437 = sbr.rel (%p435) target = $region134
        $region133: #{custom-call.2} parent=53 // pred_region
          %s438 = sshrl.u32 %s14, 3
          %440 = vsyncadd %s357, 0
          %s441 = smul.addr %s438, 2
          %s442 = scalar_lea.hbm %s3, %s441
          %s444 = sshll.u32 %s360, 4
          %s445 = int_to_ptr.vmem [resolvable:$true] %s444
          %s446 = sshll.u32 %s442, 4
          %s447 = int_to_ptr.hbm [resolvable:$true] %s446
          %449 = dma.vmem_to_hbm [thread:$0]  %s445, 32, %s447, %s357
        $region134: #{custom-call.2} parent=53 // pred_fallthru
          _
      $region54: #{custom-call.2} parent=5 // pred_fallthru
        _
      %p450 = scmp.le.s32.totalorder 2, %s9
      // Predicated region
      $region135: #{custom-call.2} parent=5 // pred_check
        %p451 = pneg %p450
      $region136: #{custom-call.2} parent=5 // pred_check_branch
        %453 = sbr.rel (%p451) target = $region138
      $region137: #{custom-call.2} parent=5 // pred_region
        %s454 = ssub.s32 %s9, 2
        %s455 = sand.u32 %s15, 1
        %s456 = sand.u32 %s15, 1
        %s457 = smul.addr %s456, 8
        %s458 = scalar_lea.vmem [#allocation1], %s457
        // Predicated region
        $region139: #{custom-call.2} parent=137 // pred_check
          %p459 = pneg %p40
        $region140: #{custom-call.2} parent=137 // pred_check_branch
          %461 = sbr.rel (%p459) target = $region142
        $region141: #{custom-call.2} parent=137 // pred_region
          %s462 = sand.u32 %s25, 1
          %s463 = sand.u32 %s25, 1
          %s464 = smul.addr %s463, 2
          %s465 = scalar_lea.vmem [#allocation3], %s464
        $region142: #{custom-call.2} parent=137 // pred_fallthru
          _
        // Predicated region
        $region143: #{custom-call.2} parent=137 // pred_check
          %p466 = pneg %p68
        $region144: #{custom-call.2} parent=137 // pred_check_branch
          %468 = sbr.rel (%p466) target = $region146
        $region145: #{custom-call.2} parent=137 // pred_region
          %s469 = sand.u32 %s53, 1
          %s470 = scalar_lea.sflag [#allocation6], %s469
          %s471 = sand.u32 %s53, 1
          %s472 = smul.addr %s471, 2
          %s473 = scalar_lea.vmem [#allocation5], %s472
          %475 = dma.done %s470, 32
        $region146: #{custom-call.2} parent=137 // pred_fallthru
          _
      $region138: #{custom-call.2} parent=5 // pred_fallthru
        _
    $region6: #{custom-call.2} parent=1 // loop_footer
      %s13 = sadd.s32 1, %s9
    $region7: #{custom-call.2} parent=1 // loop_footer_branch
      %8 = sbr.rel target = $region3
    $region8: #{custom-call.2} parent=1 // loop_exit
      _
    %476 = vsyncpa [#allocation6], 1
    %s477 = scalar_lea.sflag [#allocation6], 1
    %478 = vsyncpa %s477, 1

// kernel: waveglow_forward.1
$region0: #{waveglow_forward.1}
  #allocation0 [shape = 'u32[]', space=smem, size = 0x4, offset = 0x4, fixed_abs, tag = 'smem constant byte address 0x4 - core index']
  #allocation1 [shape = 'u32[72,128]{1,0:T(1,128)}', space=vmem, size = 0x9000, scoped, tag = 'internal scratch']
  #allocation2 [shape = 'f32[8,256]{1,0:T(8,128)}', space=vmem, size = 0x2000, scoped, tag = 'scratch operand']
  %s0 = inlined_call_operand.vmem [shape: f32[8,256], index: 0, kind: input, shape index: {}]
  %s1 = inlined_call_operand.vmem [shape: f32[2,8,16], index: 1, kind: input, shape index: {}]
  %s2 = inlined_call_operand.vmem [shape: f32[2,16,8], index: 2, kind: input, shape index: {}]
  %s3 = inlined_call_operand.vmem [shape: f32[2,8,8], index: 3, kind: input, shape index: {}]
  %s4 = inlined_call_operand.vmem [shape: f32[2,8,4], index: 4, kind: input, shape index: {}]
  %s5 = inlined_call_operand.vmem [shape: f32[2,16,8], index: 5, kind: input, shape index: {}]
  %s6 = inlined_call_operand.vmem [shape: f32[2,8,16], index: 6, kind: input, shape index: {}]
  %s7 = inlined_call_operand.vmem [shape: f32[2,4,8], index: 7, kind: input, shape index: {}]
  %s8 = inlined_call_operand.vmem [shape: f32[2,4,8], index: 8, kind: input, shape index: {}]
  %s9 = inlined_call_operand.hbm [shape: f32[8,256], index: 9, kind: output, shape index: {0}]
  %s10 = inlined_call_operand.vmem [shape: f32[2,4,256], index: 10, kind: output, shape index: {1}]
  %s11 = inlined_call_operand.vmem [shape: f32[2,2,8,128], index: 11, kind: output, shape index: {2}]
  %12 = xla_tuple %s9, %s10, %s11
  %s13 = sld [smem:[#allocation0]]
  $region93: #{waveglow_forward.1} parent=0
    _
  %s15 = ssub.s32 1, %s13
  %s16 = scalar_select 0, %s15, %s13
  $region1: #{waveglow_forward.1} parent=0
    #allocation3 [shape = 'u8[8192]{0}', space=vmem, size = 0x2000, scoped, tag = 'output window, operand 0, single buffered']
    #allocation4 [shape = 's32[2]{0}', space=sflag, size = 0x8, scoped, tag = 'scoped memory for waveglow_forward.1']
    %17 = vsyncpa [#allocation4], 0
    loop: start=0, step=1, limit=4
    $region2: #{waveglow_forward.1} parent=1 // loop_pre_header
      _
    $region3: #{waveglow_forward.1} parent=1 // loop_header
      %s19 = sphi 0, %s23
      %p20 = scmp.ge.s32.totalorder %s19, 4
      %s27 = sphi 0, %s27
      %s29 = sphi 0, %s27
      %s30 = sphi 0, %s29
      %s44 = sphi 0, %s30
      %s48 = sphi 0, %s48
      %s50 = sphi 0, %s48
      %s51 = sphi 0, %s50
      %s65 = sphi 0, %s51
      %s69 = sphi 0, %s69
      %s71 = sphi 0, %s69
      %s72 = sphi 0, %s71
      %s86 = sphi 0, %s72
      %s92 = sphi 0, %s94
      %s95 = sphi 0, %s92
      %s96 = sphi 0, %s95
      %s112 = sphi 0, %s96
      %s118 = sphi 0, %s120
      %s121 = sphi 0, %s118
      %s122 = sphi 0, %s121
      %s138 = sphi 0, %s122
      %s144 = sphi 0, %s146
      %s147 = sphi 0, %s144
      %s148 = sphi 0, %s147
      %s164 = sphi 0, %s148
      %s170 = sphi 0, %s172
      %s173 = sphi 0, %s170
      %s174 = sphi 0, %s173
      %s190 = sphi 0, %s174
      %s196 = sphi 0, %s198
      %s199 = sphi 0, %s196
      %s200 = sphi 0, %s199
      %s216 = sphi 0, %s200
      %s222 = sphi 0, %s224
      %s225 = sphi 0, %s222
      %s226 = sphi 0, %s225
      %s242 = sphi 0, %s226
      %s246 = sphi 0, %s246
      %s248 = sphi 0, %s246
      %s249 = sphi 0, %s248
      %s263 = sphi 0, %s249
      %s269 = sphi 0, %s271
      %s272 = sphi 0, %s269
      %s273 = sphi 0, %s272
      %s289 = sphi 0, %s273
      %s295 = sphi 0, %s297
      %s298 = sphi 0, %s295
      %s299 = sphi 0, %s298
      %s315 = sphi 0, %s299
    $region4: #{waveglow_forward.1} parent=1 // loop_header_branch
      %22 = sbr.rel (%p20) target = $region8
    $region5: #{waveglow_forward.1} parent=1 // loop_body
      %s24 = ssub.s32 %s19, 1
      %s25 = ssub.s32 %s19, 2
      %s26 = sadd.s32 %s19, 1
      %s28 = sadd.s32 %s27, 1
      %p31 = scmp.eq.s32.totalorder %s19, 1
      %p32 = scmp.ne.s32.totalorder %s27, %s29
      %p33 = scmp.eq.s32.totalorder %s19, 0
      %p34 = por %p32, %p33
      %p35 = scmp.ne.s32.totalorder %s27, %s29
      %p36 = scmp.eq.s32.totalorder %s24, 1
      %p37 = por %p35, %p36
      %p38 = scmp.ne.s32.totalorder %s29, %s30
      %p39 = scmp.eq.s32.totalorder %s24, 0
      %p40 = por %p38, %p39
      %p41 = scmp.ne.s32.totalorder %s29, %s30
      %p42 = scmp.eq.s32.totalorder %s25, 1
      %p43 = por %p41, %p42
      %p45 = scmp.ne.s32.totalorder %s30, %s44
      %p46 = scmp.eq.s32.totalorder %s25, 0
      %p47 = por %p45, %p46
      %s49 = sadd.s32 %s48, 1
      %p52 = scmp.eq.s32.totalorder %s19, 1
      %p53 = scmp.ne.s32.totalorder %s48, %s50
      %p54 = scmp.eq.s32.totalorder %s19, 0
      %p55 = por %p53, %p54
      %p56 = scmp.ne.s32.totalorder %s48, %s50
      %p57 = scmp.eq.s32.totalorder %s24, 1
      %p58 = por %p56, %p57
      %p59 = scmp.ne.s32.totalorder %s50, %s51
      %p60 = scmp.eq.s32.totalorder %s24, 0
      %p61 = por %p59, %p60
      %p62 = scmp.ne.s32.totalorder %s50, %s51
      %p63 = scmp.eq.s32.totalorder %s25, 1
      %p64 = por %p62, %p63
      %p66 = scmp.ne.s32.totalorder %s51, %s65
      %p67 = scmp.eq.s32.totalorder %s25, 0
      %p68 = por %p66, %p67
      %s70 = sadd.s32 %s69, 1
      %p73 = scmp.eq.s32.totalorder %s19, 1
      %p74 = scmp.ne.s32.totalorder %s69, %s71
      %p75 = scmp.eq.s32.totalorder %s19, 0
      %p76 = por %p74, %p75
      %p77 = scmp.ne.s32.totalorder %s69, %s71
      %p78 = scmp.eq.s32.totalorder %s24, 1
      %p79 = por %p77, %p78
      %p80 = scmp.ne.s32.totalorder %s71, %s72
      %p81 = scmp.eq.s32.totalorder %s24, 0
      %p82 = por %p80, %p81
      %p83 = scmp.ne.s32.totalorder %s71, %s72
      %p84 = scmp.eq.s32.totalorder %s25, 1
      %p85 = por %p83, %p84
      %p87 = scmp.ne.s32.totalorder %s72, %s86
      %p88 = scmp.eq.s32.totalorder %s25, 0
      %p89 = por %p87, %p88
      %s90 = ssub.s32 %s19, %s26
      %p91 = scmp.eq.s32.totalorder %s90, 0
      %s93 = sadd.s32 %s92, 1
      %s94 = scalar_select %p91, %s92, %s93
      %p97 = pneg %p91
      %p98 = scmp.eq.s32.totalorder %s19, 1
      %p99 = por %p97, %p98
      %p100 = scmp.ne.s32.totalorder %s92, %s95
      %p101 = scmp.eq.s32.totalorder %s19, 0
      %p102 = por %p100, %p101
      %p103 = scmp.ne.s32.totalorder %s92, %s95
      %p104 = scmp.eq.s32.totalorder %s24, 1
      %p105 = por %p103, %p104
      %p106 = scmp.ne.s32.totalorder %s95, %s96
      %p107 = scmp.eq.s32.totalorder %s24, 0
      %p108 = por %p106, %p107
      %p109 = scmp.ne.s32.totalorder %s95, %s96
      %p110 = scmp.eq.s32.totalorder %s25, 1
      %p111 = por %p109, %p110
      %p113 = scmp.ne.s32.totalorder %s96, %s112
      %p114 = scmp.eq.s32.totalorder %s25, 0
      %p115 = por %p113, %p114
      %s116 = ssub.s32 %s19, %s26
      %p117 = scmp.eq.s32.totalorder %s116, 0
      %s119 = sadd.s32 %s118, 1
      %s120 = scalar_select %p117, %s118, %s119
      %p123 = pneg %p117
      %p124 = scmp.eq.s32.totalorder %s19, 1
      %p125 = por %p123, %p124
      %p126 = scmp.ne.s32.totalorder %s118, %s121
      %p127 = scmp.eq.s32.totalorder %s19, 0
      %p128 = por %p126, %p127
      %p129 = scmp.ne.s32.totalorder %s118, %s121
      %p130 = scmp.eq.s32.totalorder %s24, 1
      %p131 = por %p129, %p130
      %p132 = scmp.ne.s32.totalorder %s121, %s122
      %p133 = scmp.eq.s32.totalorder %s24, 0
      %p134 = por %p132, %p133
      %p135 = scmp.ne.s32.totalorder %s121, %s122
      %p136 = scmp.eq.s32.totalorder %s25, 1
      %p137 = por %p135, %p136
      %p139 = scmp.ne.s32.totalorder %s122, %s138
      %p140 = scmp.eq.s32.totalorder %s25, 0
      %p141 = por %p139, %p140
      %s142 = ssub.s32 %s19, %s26
      %p143 = scmp.eq.s32.totalorder %s142, 0
      %s145 = sadd.s32 %s144, 1
      %s146 = scalar_select %p143, %s144, %s145
      %p149 = pneg %p143
      %p150 = scmp.eq.s32.totalorder %s19, 1
      %p151 = por %p149, %p150
      %p152 = scmp.ne.s32.totalorder %s144, %s147
      %p153 = scmp.eq.s32.totalorder %s19, 0
      %p154 = por %p152, %p153
      %p155 = scmp.ne.s32.totalorder %s144, %s147
      %p156 = scmp.eq.s32.totalorder %s24, 1
      %p157 = por %p155, %p156
      %p158 = scmp.ne.s32.totalorder %s147, %s148
      %p159 = scmp.eq.s32.totalorder %s24, 0
      %p160 = por %p158, %p159
      %p161 = scmp.ne.s32.totalorder %s147, %s148
      %p162 = scmp.eq.s32.totalorder %s25, 1
      %p163 = por %p161, %p162
      %p165 = scmp.ne.s32.totalorder %s148, %s164
      %p166 = scmp.eq.s32.totalorder %s25, 0
      %p167 = por %p165, %p166
      %s168 = ssub.s32 %s19, %s26
      %p169 = scmp.eq.s32.totalorder %s168, 0
      %s171 = sadd.s32 %s170, 1
      %s172 = scalar_select %p169, %s170, %s171
      %p175 = pneg %p169
      %p176 = scmp.eq.s32.totalorder %s19, 1
      %p177 = por %p175, %p176
      %p178 = scmp.ne.s32.totalorder %s170, %s173
      %p179 = scmp.eq.s32.totalorder %s19, 0
      %p180 = por %p178, %p179
      %p181 = scmp.ne.s32.totalorder %s170, %s173
      %p182 = scmp.eq.s32.totalorder %s24, 1
      %p183 = por %p181, %p182
      %p184 = scmp.ne.s32.totalorder %s173, %s174
      %p185 = scmp.eq.s32.totalorder %s24, 0
      %p186 = por %p184, %p185
      %p187 = scmp.ne.s32.totalorder %s173, %s174
      %p188 = scmp.eq.s32.totalorder %s25, 1
      %p189 = por %p187, %p188
      %p191 = scmp.ne.s32.totalorder %s174, %s190
      %p192 = scmp.eq.s32.totalorder %s25, 0
      %p193 = por %p191, %p192
      %s194 = ssub.s32 %s19, %s26
      %p195 = scmp.eq.s32.totalorder %s194, 0
      %s197 = sadd.s32 %s196, 1
      %s198 = scalar_select %p195, %s196, %s197
      %p201 = pneg %p195
      %p202 = scmp.eq.s32.totalorder %s19, 1
      %p203 = por %p201, %p202
      %p204 = scmp.ne.s32.totalorder %s196, %s199
      %p205 = scmp.eq.s32.totalorder %s19, 0
      %p206 = por %p204, %p205
      %p207 = scmp.ne.s32.totalorder %s196, %s199
      %p208 = scmp.eq.s32.totalorder %s24, 1
      %p209 = por %p207, %p208
      %p210 = scmp.ne.s32.totalorder %s199, %s200
      %p211 = scmp.eq.s32.totalorder %s24, 0
      %p212 = por %p210, %p211
      %p213 = scmp.ne.s32.totalorder %s199, %s200
      %p214 = scmp.eq.s32.totalorder %s25, 1
      %p215 = por %p213, %p214
      %p217 = scmp.ne.s32.totalorder %s200, %s216
      %p218 = scmp.eq.s32.totalorder %s25, 0
      %p219 = por %p217, %p218
      %s220 = ssub.s32 %s19, %s26
      %p221 = scmp.eq.s32.totalorder %s220, 0
      %s223 = sadd.s32 %s222, 1
      %s224 = scalar_select %p221, %s222, %s223
      %p227 = pneg %p221
      %p228 = scmp.eq.s32.totalorder %s19, 1
      %p229 = por %p227, %p228
      %p230 = scmp.ne.s32.totalorder %s222, %s225
      %p231 = scmp.eq.s32.totalorder %s19, 0
      %p232 = por %p230, %p231
      %p233 = scmp.ne.s32.totalorder %s222, %s225
      %p234 = scmp.eq.s32.totalorder %s24, 1
      %p235 = por %p233, %p234
      %p236 = scmp.ne.s32.totalorder %s225, %s226
      %p237 = scmp.eq.s32.totalorder %s24, 0
      %p238 = por %p236, %p237
      %p239 = scmp.ne.s32.totalorder %s225, %s226
      %p240 = scmp.eq.s32.totalorder %s25, 1
      %p241 = por %p239, %p240
      %p243 = scmp.ne.s32.totalorder %s226, %s242
      %p244 = scmp.eq.s32.totalorder %s25, 0
      %p245 = por %p243, %p244
      %s247 = sadd.s32 %s246, 1
      %p250 = scmp.eq.s32.totalorder %s19, 1
      %p251 = scmp.ne.s32.totalorder %s246, %s248
      %p252 = scmp.eq.s32.totalorder %s19, 0
      %p253 = por %p251, %p252
      %p254 = scmp.ne.s32.totalorder %s246, %s248
      %p255 = scmp.eq.s32.totalorder %s24, 1
      %p256 = por %p254, %p255
      %p257 = scmp.ne.s32.totalorder %s248, %s249
      %p258 = scmp.eq.s32.totalorder %s24, 0
      %p259 = por %p257, %p258
      %p260 = scmp.ne.s32.totalorder %s248, %s249
      %p261 = scmp.eq.s32.totalorder %s25, 1
      %p262 = por %p260, %p261
      %p264 = scmp.ne.s32.totalorder %s249, %s263
      %p265 = scmp.eq.s32.totalorder %s25, 0
      %p266 = por %p264, %p265
      %s267 = ssub.s32 %s19, %s26
      %p268 = scmp.eq.s32.totalorder %s267, 0
      %s270 = sadd.s32 %s269, 1
      %s271 = scalar_select %p268, %s269, %s270
      %p274 = pneg %p268
      %p275 = scmp.eq.s32.totalorder %s19, 1
      %p276 = por %p274, %p275
      %p277 = scmp.ne.s32.totalorder %s269, %s272
      %p278 = scmp.eq.s32.totalorder %s19, 0
      %p279 = por %p277, %p278
      %p280 = scmp.ne.s32.totalorder %s269, %s272
      %p281 = scmp.eq.s32.totalorder %s24, 1
      %p282 = por %p280, %p281
      %p283 = scmp.ne.s32.totalorder %s272, %s273
      %p284 = scmp.eq.s32.totalorder %s24, 0
      %p285 = por %p283, %p284
      %p286 = scmp.ne.s32.totalorder %s272, %s273
      %p287 = scmp.eq.s32.totalorder %s25, 1
      %p288 = por %p286, %p287
      %p290 = scmp.ne.s32.totalorder %s273, %s289
      %p291 = scmp.eq.s32.totalorder %s25, 0
      %p292 = por %p290, %p291
      %s293 = ssub.s32 %s19, %s26
      %p294 = scmp.eq.s32.totalorder %s293, 0
      %s296 = sadd.s32 %s295, 1
      %s297 = scalar_select %p294, %s295, %s296
      %p300 = pneg %p294
      %p301 = scmp.eq.s32.totalorder %s19, 1
      %p302 = por %p300, %p301
      %p303 = scmp.ne.s32.totalorder %s295, %s298
      %p304 = scmp.eq.s32.totalorder %s19, 0
      %p305 = por %p303, %p304
      %p306 = scmp.ne.s32.totalorder %s295, %s298
      %p307 = scmp.eq.s32.totalorder %s24, 1
      %p308 = por %p306, %p307
      %p309 = scmp.ne.s32.totalorder %s298, %s299
      %p310 = scmp.eq.s32.totalorder %s24, 0
      %p311 = por %p309, %p310
      %p312 = scmp.ne.s32.totalorder %s298, %s299
      %p313 = scmp.eq.s32.totalorder %s25, 1
      %p314 = por %p312, %p313
      %p316 = scmp.ne.s32.totalorder %s299, %s315
      %p317 = scmp.eq.s32.totalorder %s25, 0
      %p318 = por %p316, %p317
      %p319 = scmp.le.s32.totalorder 1, %s19
      %p320 = scmp.lt.s32.totalorder %s19, 3
      %p321 = pnand %p319, %p320
      %p322 = pneg %p321
      // Predicated region
      $region9: #{waveglow_forward.1} parent=5 // pred_check
        _
      $region10: #{waveglow_forward.1} parent=5 // pred_check_branch
        %324 = sbr.rel (%p321) target = $region12
      $region11: #{waveglow_forward.1} parent=5 // pred_region
        %s325 = ssub.s32 %s19, 1
        // Predicated region
        $region13: #{waveglow_forward.1} parent=11 // pred_check
          %p326 = pneg %p40
        $region14: #{waveglow_forward.1} parent=11 // pred_check_branch
          %328 = sbr.rel (%p326) target = $region16
        $region15: #{waveglow_forward.1} parent=11 // pred_region
          _
        $region16: #{waveglow_forward.1} parent=11 // pred_fallthru
          _
        // Predicated region
        $region17: #{waveglow_forward.1} parent=11 // pred_check
          %p329 = pneg %p61
        $region18: #{waveglow_forward.1} parent=11 // pred_check_branch
          %331 = sbr.rel (%p329) target = $region20
        $region19: #{waveglow_forward.1} parent=11 // pred_region
          _
        $region20: #{waveglow_forward.1} parent=11 // pred_fallthru
          _
        // Predicated region
        $region21: #{waveglow_forward.1} parent=11 // pred_check
          %p332 = pneg %p82
        $region22: #{waveglow_forward.1} parent=11 // pred_check_branch
          %334 = sbr.rel (%p332) target = $region24
        $region23: #{waveglow_forward.1} parent=11 // pred_region
          _
        $region24: #{waveglow_forward.1} parent=11 // pred_fallthru
          _
      $region12: #{waveglow_forward.1} parent=5 // pred_fallthru
        _
      %p335 = scmp.lt.s32.totalorder %s19, 2
      // Predicated region
      $region25: #{waveglow_forward.1} parent=5 // pred_check
        %p336 = pneg %p335
      $region26: #{waveglow_forward.1} parent=5 // pred_check_branch
        %338 = sbr.rel (%p336) target = $region28
      $region27: #{waveglow_forward.1} parent=5 // pred_region
        // Predicated region
        $region29: #{waveglow_forward.1} parent=27 // pred_check
          %p339 = pneg %p102
        $region30: #{waveglow_forward.1} parent=27 // pred_check_branch
          %341 = sbr.rel (%p339) target = $region32
        $region31: #{waveglow_forward.1} parent=27 // pred_region
          %p342 = scmp.lt.s32.totalorder %s19, 1
          %s343 = scalar_select %p342, %s19, 1
          %s344 = smul.addr %s343, 8
          %s345 = scalar_lea.vmem %s3, %s344
        $region32: #{waveglow_forward.1} parent=27 // pred_fallthru
          _
        // Predicated region
        $region33: #{waveglow_forward.1} parent=27 // pred_check
          %p346 = pneg %p128
        $region34: #{waveglow_forward.1} parent=27 // pred_check_branch
          %348 = sbr.rel (%p346) target = $region36
        $region35: #{waveglow_forward.1} parent=27 // pred_region
          %p349 = scmp.lt.s32.totalorder %s19, 1
          %s350 = scalar_select %p349, %s19, 1
          %s351 = smul.addr %s350, 8
          %s352 = scalar_lea.vmem %s4, %s351
        $region36: #{waveglow_forward.1} parent=27 // pred_fallthru
          _
        // Predicated region
        $region37: #{waveglow_forward.1} parent=27 // pred_check
          %p353 = pneg %p154
        $region38: #{waveglow_forward.1} parent=27 // pred_check_branch
          %355 = sbr.rel (%p353) target = $region40
        $region39: #{waveglow_forward.1} parent=27 // pred_region
          %p356 = scmp.lt.s32.totalorder %s19, 1
          %s357 = scalar_select %p356, %s19, 1
          %s358 = smul.addr %s357, 2
          %s359 = smul.addr %s358, 8
          %s360 = scalar_lea.vmem %s5, %s359
        $region40: #{waveglow_forward.1} parent=27 // pred_fallthru
          _
        // Predicated region
        $region41: #{waveglow_forward.1} parent=27 // pred_check
          %p361 = pneg %p180
        $region42: #{waveglow_forward.1} parent=27 // pred_check_branch
          %363 = sbr.rel (%p361) target = $region44
        $region43: #{waveglow_forward.1} parent=27 // pred_region
          %p364 = scmp.lt.s32.totalorder %s19, 1
          %s365 = scalar_select %p364, %s19, 1
          %s366 = smul.addr %s365, 8
          %s367 = scalar_lea.vmem %s6, %s366
        $region44: #{waveglow_forward.1} parent=27 // pred_fallthru
          _
        // Predicated region
        $region45: #{waveglow_forward.1} parent=27 // pred_check
          %p368 = pneg %p206
        $region46: #{waveglow_forward.1} parent=27 // pred_check_branch
          %370 = sbr.rel (%p368) target = $region48
        $region47: #{waveglow_forward.1} parent=27 // pred_region
          %p371 = scmp.lt.s32.totalorder %s19, 1
          %s372 = scalar_select %p371, %s19, 1
          %s373 = smul.addr %s372, 4
          %s374 = scalar_lea.vmem %s7, %s373
        $region48: #{waveglow_forward.1} parent=27 // pred_fallthru
          _
        // Predicated region
        $region49: #{waveglow_forward.1} parent=27 // pred_check
          %p375 = pneg %p232
        $region50: #{waveglow_forward.1} parent=27 // pred_check_branch
          %377 = sbr.rel (%p375) target = $region52
        $region51: #{waveglow_forward.1} parent=27 // pred_region
          %p378 = scmp.lt.s32.totalorder %s19, 1
          %s379 = scalar_select %p378, %s19, 1
          %s380 = smul.addr %s379, 4
          %s381 = scalar_lea.vmem %s8, %s380
        $region52: #{waveglow_forward.1} parent=27 // pred_fallthru
          _
      $region28: #{waveglow_forward.1} parent=5 // pred_fallthru
        _
      %p382 = scmp.le.s32.totalorder 1, %s19
      %p383 = scmp.lt.s32.totalorder %s19, 3
      %p384 = pnand %p382, %p383
      %p385 = pneg %p384
      // Predicated region
      $region53: #{waveglow_forward.1} parent=5 // pred_check
        _
      $region54: #{waveglow_forward.1} parent=5 // pred_check_branch
        %387 = sbr.rel (%p384) target = $region56
      $region55: #{waveglow_forward.1} parent=5 // pred_region
        %s388 = ssub.s32 %s19, 1
        %p389 = pneg %p40
        %p390 = pneg %p37
        %p391 = pneg %p61
        %p392 = pneg %p58
        %p393 = pneg %p82
        %p394 = pneg %p79
        %p395 = scmp.lt.s32.totalorder %s24, 1
        %s396 = scalar_select %p395, %s24, 1
        %s397 = smul.addr %s396, 8
        %s398 = scalar_lea.vmem %s3, %s397
        %p399 = pneg %p108
        %p400 = pneg %p105
        %p401 = scmp.lt.s32.totalorder %s24, 1
        %s402 = scalar_select %p401, %s24, 1
        %s403 = smul.addr %s402, 8
        %s404 = scalar_lea.vmem %s4, %s403
        %p405 = pneg %p134
        %p406 = pneg %p131
        %p407 = scmp.lt.s32.totalorder %s24, 1
        %s408 = scalar_select %p407, %s24, 1
        %s409 = smul.addr %s408, 2
        %s410 = smul.addr %s409, 8
        %s411 = scalar_lea.vmem %s5, %s410
        %p412 = pneg %p160
        %p413 = pneg %p157
        %p414 = scmp.lt.s32.totalorder %s24, 1
        %s415 = scalar_select %p414, %s24, 1
        %s416 = smul.addr %s415, 8
        %s417 = scalar_lea.vmem %s6, %s416
        %p418 = pneg %p186
        %p419 = pneg %p183
        %p420 = scmp.lt.s32.totalorder %s24, 1
        %s421 = scalar_select %p420, %s24, 1
        %s422 = smul.addr %s421, 4
        %s423 = scalar_lea.vmem %s7, %s422
        %p424 = pneg %p212
        %p425 = pneg %p209
        %p426 = scmp.lt.s32.totalorder %s24, 1
        %s427 = scalar_select %p426, %s24, 1
        %s428 = smul.addr %s427, 4
        %s429 = scalar_lea.vmem %s8, %s428
        %p430 = pneg %p238
        %p431 = pneg %p235
        %p432 = pneg %p259
        %p433 = pneg %p256
        %p434 = pneg %p285
        %p435 = pneg %p282
        %p436 = scmp.lt.s32.totalorder %s24, 1
        %s437 = scalar_select %p436, %s24, 1
        %s438 = smul.addr %s437, 2
        %s439 = smul.addr %s438, 4
        %s440 = scalar_lea.vmem %s10, %s439
        %p441 = pneg %p311
        %p442 = pneg %p308
        %p443 = scmp.lt.s32.totalorder %s24, 1
        %s444 = scalar_select %p443, %s24, 1
        %s445 = smul.addr %s444, 2
        %s446 = smul.addr %s445, 8
        %s447 = scalar_lea.vmem %s11, %s446
        %p448 = scmp.lt.s32.totalorder %s24, 1
        %s449 = scalar_select %p448, %s24, 1
        %s450 = smul.addr %s449, 8
        %s451 = scalar_lea.vmem %s3, %s450
        %p452 = scmp.lt.s32.totalorder %s24, 1
        %s453 = scalar_select %p452, %s24, 1
        %s454 = smul.addr %s453, 8
        %s455 = scalar_lea.vmem %s4, %s454
        %p456 = scmp.lt.s32.totalorder %s24, 1
        %s457 = scalar_select %p456, %s24, 1
        %s458 = smul.addr %s457, 2
        %s459 = smul.addr %s458, 8
        %s460 = scalar_lea.vmem %s5, %s459
        %p461 = scmp.lt.s32.totalorder %s24, 1
        %s462 = scalar_select %p461, %s24, 1
        %s463 = smul.addr %s462, 8
        %s464 = scalar_lea.vmem %s6, %s463
        %p465 = scmp.lt.s32.totalorder %s24, 1
        %s466 = scalar_select %p465, %s24, 1
        %s467 = smul.addr %s466, 4
        %s468 = scalar_lea.vmem %s7, %s467
        %p469 = scmp.lt.s32.totalorder %s24, 1
        %s470 = scalar_select %p469, %s24, 1
        %s471 = smul.addr %s470, 4
        %s472 = scalar_lea.vmem %s8, %s471
        %p473 = scmp.lt.s32.totalorder %s24, 1
        %s474 = scalar_select %p473, %s24, 1
        %s475 = smul.addr %s474, 2
        %s476 = smul.addr %s475, 4
        %s477 = scalar_lea.vmem %s10, %s476
        %p478 = scmp.lt.s32.totalorder %s24, 1
        %s479 = scalar_select %p478, %s24, 1
        %s480 = smul.addr %s479, 2
        %s481 = smul.addr %s480, 8
        %s482 = scalar_lea.vmem %s11, %s481
        %p483 = scmp.eq.s32.totalorder %s24, 0
        // Predicated region
        $region57: #{waveglow_forward.1} parent=55 // pred_check
          %p484 = pneg %p483
        $region58: #{waveglow_forward.1} parent=55 // pred_check_branch
          %486 = sbr.rel (%p484) target = $region60
        $region59: #{waveglow_forward.1} parent=55 // pred_region
          %v487 = vld [vmem:[%s0] sm:$0xff]
          %v488 = vld [vmem:[%s0 + $0x8] sm:$0xff]
          %489 = vst [vmem:[#allocation2] sm:$0xff] %v487
          %490 = vst [vmem:[#allocation2 + $0x8] sm:$0xff] %v488
        $region60: #{waveglow_forward.1} parent=55 // pred_fallthru
          _
        %v491 = vld [vmem:[#allocation2] sm:$0xff]
        %v492 = vld [vmem:[#allocation2 + $0x8] sm:$0xff]
        %v493 = vld [vmem:[%s451] sm:$0xff]
        %vm494 = vcmask 64512
        %v496 = vsel %vm494, %v493, 0
        %498 = vmatpush.msra.mxu0 0.0
        %499 = vmatpush.msra.mxu0 0.0
        %500 = vmatpush.msra.mxu0 0.0
        %501 = vmatpush.msra.mxu0 0.0
        %502 = vmatpush.msra.mxu0 0.0
        %503 = vmatpush.msra.mxu0 0.0
        %504 = vmatpush.msra.mxu0 0.0
        %505 = vmatpush.msra.mxu0 0.0
        %506 = vmatpush.msra.mxu0 0.0
        %507 = vmatpush.msra.mxu0 0.0
        %508 = vmatpush.msra.mxu0 0.0
        %509 = vmatpush.msra.mxu0 0.0
        %510 = vmatpush.msra.mxu0 0.0
        %511 = vmatpush.msra.mxu0 0.0
        %512 = vmatpush.msra.mxu0 0.0
        %513 = vmatpush.msra.mxu0 %v491
        %514 = vmatmul.f32.gmra.mxu0 %v496
        %v515 = vpop.f32.mrf.mxu0
        %v516 = vadd.f32 0.0, %v515
        %517 = vdwg.mxu0
        %518 = vmatpush.msra.mxu0 0.0
        %519 = vmatpush.msra.mxu0 0.0
        %520 = vmatpush.msra.mxu0 0.0
        %521 = vmatpush.msra.mxu0 0.0
        %522 = vmatpush.msra.mxu0 0.0
        %523 = vmatpush.msra.mxu0 0.0
        %524 = vmatpush.msra.mxu0 0.0
        %525 = vmatpush.msra.mxu0 0.0
        %526 = vmatpush.msra.mxu0 0.0
        %527 = vmatpush.msra.mxu0 0.0
        %528 = vmatpush.msra.mxu0 0.0
        %529 = vmatpush.msra.mxu0 0.0
        %530 = vmatpush.msra.mxu0 0.0
        %531 = vmatpush.msra.mxu0 0.0
        %532 = vmatpush.msra.mxu0 0.0
        %533 = vmatpush.msra.mxu0 %v492
        %534 = vmatmul.f32.gmra.mxu0 %v496
        %v535 = vpop.f32.mrf.mxu0
        %v536 = vadd.f32 0.0, %v535
        %537 = vdwg.mxu0
        %v538 = vld [vmem:[%s455] sm:$0xff]
        %vm539 = vcmask 31744
        %v541 = vsel %vm539, %v538, 0
        %vm543 = vcmask 1043456
        %v545 = vsel %vm543, %v516, 0
        %v548 = vsel %vm543, %v536, 0
        %550 = vmatpush.msra.mxu0 0.0
        %551 = vmatpush.msra.mxu0 0.0
        %552 = vmatpush.msra.mxu0 0.0
        %553 = vmatpush.msra.mxu0 0.0
        %554 = vmatpush.msra.mxu0 0.0
        %555 = vmatpush.msra.mxu0 0.0
        %556 = vmatpush.msra.mxu0 0.0
        %557 = vmatpush.msra.mxu0 0.0
        %558 = vmatpush.msra.mxu0 0.0
        %559 = vmatpush.msra.mxu0 0.0
        %560 = vmatpush.msra.mxu0 0.0
        %561 = vmatpush.msra.mxu0 0.0
        %562 = vmatpush.msra.mxu0 0.0
        %563 = vmatpush.msra.mxu0 0.0
        %564 = vmatpush.msra.mxu0 0.0
        %565 = vmatpush.msra.mxu0 %v545
        %566 = vmatmul.f32.gmra.mxu0 %v541
        %v567 = vpop.f32.mrf.mxu0
        %v568 = vadd.f32 0.0, %v567
        %569 = vdwg.mxu0
        %570 = vmatpush.msra.mxu0 0.0
        %571 = vmatpush.msra.mxu0 0.0
        %572 = vmatpush.msra.mxu0 0.0
        %573 = vmatpush.msra.mxu0 0.0
        %574 = vmatpush.msra.mxu0 0.0
        %575 = vmatpush.msra.mxu0 0.0
        %576 = vmatpush.msra.mxu0 0.0
        %577 = vmatpush.msra.mxu0 0.0
        %578 = vmatpush.msra.mxu0 0.0
        %579 = vmatpush.msra.mxu0 0.0
        %580 = vmatpush.msra.mxu0 0.0
        %581 = vmatpush.msra.mxu0 0.0
        %582 = vmatpush.msra.mxu0 0.0
        %583 = vmatpush.msra.mxu0 0.0
        %584 = vmatpush.msra.mxu0 0.0
        %585 = vmatpush.msra.mxu0 %v548
        %586 = vmatmul.f32.gmra.mxu0 %v541
        %v587 = vpop.f32.mrf.mxu0
        %v588 = vadd.f32 0.0, %v587
        %589 = vdwg.mxu0
        %v590 = vld [vmem:[%s1] sm:$0xff]
        %v591 = vld [vmem:[%s460] sm:$0xff]
        %v592 = vld [vmem:[%s460 + $0x8] sm:$0xff]
        %vm593 = vcmask 130048
        %v595 = vsel %vm593, %v590, 0
        %597 = vmatpush.msra.mxu0 0.0
        %598 = vmatpush.msra.mxu0 0.0
        %599 = vmatpush.msra.mxu0 0.0
        %600 = vmatpush.msra.mxu0 0.0
        %601 = vmatpush.msra.mxu0 0.0
        %602 = vmatpush.msra.mxu0 0.0
        %603 = vmatpush.msra.mxu0 0.0
        %604 = vmatpush.msra.mxu0 0.0
        %605 = vmatpush.msra.mxu0 0.0
        %606 = vmatpush.msra.mxu0 0.0
        %607 = vmatpush.msra.mxu0 0.0
        %608 = vmatpush.msra.mxu0 0.0
        %609 = vmatpush.msra.mxu0 0.0
        %610 = vmatpush.msra.mxu0 0.0
        %611 = vmatpush.msra.mxu0 %v592
        %612 = vmatpush.msra.mxu0 %v591
        %613 = vmatmul.f32.gmra.mxu0 %v595
        %v614 = vpop.f32.mrf.mxu0
        %v615 = vadd.f32 0.0, %v614
        %616 = vdwg.mxu0
        %v617 = vld [vmem:[%s464] sm:$0xff]
        %v618 = vld [vmem:[%s2] sm:$0xff]
        %v619 = vld [vmem:[%s2 + $0x8] sm:$0xff]
        %v621 = vsel %vm593, %v617, 0
        %623 = vmatpush.msra.mxu0 0.0
        %624 = vmatpush.msra.mxu0 0.0
        %625 = vmatpush.msra.mxu0 0.0
        %626 = vmatpush.msra.mxu0 0.0
        %627 = vmatpush.msra.mxu0 0.0
        %628 = vmatpush.msra.mxu0 0.0
        %629 = vmatpush.msra.mxu0 0.0
        %630 = vmatpush.msra.mxu0 0.0
        %631 = vmatpush.msra.mxu0 0.0
        %632 = vmatpush.msra.mxu0 0.0
        %633 = vmatpush.msra.mxu0 0.0
        %634 = vmatpush.msra.mxu0 0.0
        %635 = vmatpush.msra.mxu0 0.0
        %636 = vmatpush.msra.mxu0 0.0
        %637 = vmatpush.msra.mxu0 %v619
        %638 = vmatpush.msra.mxu0 %v618
        %639 = vmatmul.f32.gmra.mxu0 %v621
        %v640 = vpop.f32.mrf.mxu0
        %v641 = vadd.f32 0.0, %v640
        %642 = vdwg.mxu0
        %v644 = vsel %vm494, %v615, 0
        %646 = vmatpush.msra.mxu0 0.0
        %647 = vmatpush.msra.mxu0 0.0
        %648 = vmatpush.msra.mxu0 0.0
        %649 = vmatpush.msra.mxu0 0.0
        %650 = vmatpush.msra.mxu0 0.0
        %651 = vmatpush.msra.mxu0 0.0
        %652 = vmatpush.msra.mxu0 0.0
        %653 = vmatpush.msra.mxu0 0.0
        %654 = vmatpush.msra.mxu0 0.0
        %655 = vmatpush.msra.mxu0 0.0
        %656 = vmatpush.msra.mxu0 0.0
        %657 = vmatpush.msra.mxu0 0.0
        %658 = vmatpush.msra.mxu0 0.0
        %659 = vmatpush.msra.mxu0 0.0
        %660 = vmatpush.msra.mxu0 0.0
        %661 = vmatpush.msra.mxu0 %v568
        %662 = vmatmul.f32.gmra.mxu0 %v644
        %v663 = vpop.f32.mrf.mxu0
        %v664 = vadd.f32 0.0, %v663
        %665 = vdwg.mxu0
        %v666 = vmul.f32 %v664, 0.35355338
        %v667 = vrot.slane %v666, 4
        %v668 = vmax.f32 %v666, %v667
        %v669 = vrot.slane %v668, 2
        %v670 = vmax.f32 %v668, %v669
        %v671 = vrot.slane %v670, 1
        %v672 = vmax.f32 %v670, %v671
        %v673 = vsub.f32 %v666, %v672
        %v674 = vmul.f32 %v673, 1.442695
        %v675 = vpow.pop %v674
        %v676 = vrot.slane %v675, 4
        %v677 = vadd.f32 %v675, %v676
        %v678 = vrot.slane %v677, 2
        %v679 = vadd.f32 %v677, %v678
        %v680 = vrot.slane %v679, 1
        %v681 = vadd.f32 %v679, %v680
        %v682 = vrcp.pop %v681
        %v683 = vmul.f32 %v675, %v682
        %v685 = vsel %vm494, %v641, 0
        %687 = vmatpush.msra.mxu0 0.0
        %688 = vmatpush.msra.mxu0 0.0
        %689 = vmatpush.msra.mxu0 0.0
        %690 = vmatpush.msra.mxu0 0.0
        %691 = vmatpush.msra.mxu0 0.0
        %692 = vmatpush.msra.mxu0 0.0
        %693 = vmatpush.msra.mxu0 0.0
        %694 = vmatpush.msra.mxu0 0.0
        %695 = vmatpush.msra.mxu0 0.0
        %696 = vmatpush.msra.mxu0 0.0
        %697 = vmatpush.msra.mxu0 0.0
        %698 = vmatpush.msra.mxu0 0.0
        %699 = vmatpush.msra.mxu0 0.0
        %700 = vmatpush.msra.mxu0 0.0
        %701 = vmatpush.msra.mxu0 0.0
        %702 = vmatpush.msra.mxu0 %v683
        %703 = vmatmul.f32.gmra.mxu0 %v685
        %v704 = vpop.f32.mrf.mxu0
        %v705 = vadd.f32 0.0, %v704
        %706 = vdwg.mxu0
        %v707 = vld [vmem:[%s468] sm:$0xf]
        %v709 = vsel %vm494, %v707, 0
        %711 = vmatpush.msra.mxu0 0.0
        %712 = vmatpush.msra.mxu0 0.0
        %713 = vmatpush.msra.mxu0 0.0
        %714 = vmatpush.msra.mxu0 0.0
        %715 = vmatpush.msra.mxu0 0.0
        %716 = vmatpush.msra.mxu0 0.0
        %717 = vmatpush.msra.mxu0 0.0
        %718 = vmatpush.msra.mxu0 0.0
        %719 = vmatpush.msra.mxu0 0.0
        %720 = vmatpush.msra.mxu0 0.0
        %721 = vmatpush.msra.mxu0 0.0
        %722 = vmatpush.msra.mxu0 0.0
        %723 = vmatpush.msra.mxu0 0.0
        %724 = vmatpush.msra.mxu0 0.0
        %725 = vmatpush.msra.mxu0 0.0
        %726 = vmatpush.msra.mxu0 %v705
        %727 = vmatmul.f32.gmra.mxu0 %v709
        %v728 = vpop.f32.mrf.mxu0
        %v729 = vadd.f32 0.0, %v728
        %730 = vdwg.mxu0
        %v731 = vld [vmem:[%s472] sm:$0xf]
        %v733 = vsel %vm494, %v731, 0
        %735 = vmatpush.msra.mxu0 0.0
        %736 = vmatpush.msra.mxu0 0.0
        %737 = vmatpush.msra.mxu0 0.0
        %738 = vmatpush.msra.mxu0 0.0
        %739 = vmatpush.msra.mxu0 0.0
        %740 = vmatpush.msra.mxu0 0.0
        %741 = vmatpush.msra.mxu0 0.0
        %742 = vmatpush.msra.mxu0 0.0
        %743 = vmatpush.msra.mxu0 0.0
        %744 = vmatpush.msra.mxu0 0.0
        %745 = vmatpush.msra.mxu0 0.0
        %746 = vmatpush.msra.mxu0 0.0
        %747 = vmatpush.msra.mxu0 0.0
        %748 = vmatpush.msra.mxu0 0.0
        %749 = vmatpush.msra.mxu0 0.0
        %750 = vmatpush.msra.mxu0 %v705
        %751 = vmatmul.f32.gmra.mxu0 %v733
        %v752 = vpop.f32.mrf.mxu0
        %v753 = vadd.f32 0.0, %v752
        %754 = vdwg.mxu0
        %v755 = vmul.f32 %v753, 1.442695
        %v756 = vpow.pop %v755
        %v757 = vrot.slane %v516, 4
        %v759 = vmul.f32 %v756, %v757
        %v760 = vadd.f32 %v759, %v729
        %761 = vst [vmem:[%s482] sm:$0xff] %v683
        %s762 = scalar_lea.vmem %s1, 8
        %v763 = vld [vmem:[%s762] sm:$0xff]
        %v764 = vld [vmem:[%s460] sm:$0xff]
        %v765 = vld [vmem:[%s460 + $0x8] sm:$0xff]
        %v767 = vsel %vm593, %v763, 0
        %769 = vmatpush.msra.mxu0 0.0
        %770 = vmatpush.msra.mxu0 0.0
        %771 = vmatpush.msra.mxu0 0.0
        %772 = vmatpush.msra.mxu0 0.0
        %773 = vmatpush.msra.mxu0 0.0
        %774 = vmatpush.msra.mxu0 0.0
        %775 = vmatpush.msra.mxu0 0.0
        %776 = vmatpush.msra.mxu0 0.0
        %777 = vmatpush.msra.mxu0 0.0
        %778 = vmatpush.msra.mxu0 0.0
        %779 = vmatpush.msra.mxu0 0.0
        %780 = vmatpush.msra.mxu0 0.0
        %781 = vmatpush.msra.mxu0 0.0
        %782 = vmatpush.msra.mxu0 0.0
        %783 = vmatpush.msra.mxu0 %v765
        %784 = vmatpush.msra.mxu0 %v764
        %785 = vmatmul.f32.gmra.mxu0 %v767
        %v786 = vpop.f32.mrf.mxu0
        %v787 = vadd.f32 0.0, %v786
        %788 = vdwg.mxu0
        %v789 = vld [vmem:[%s464] sm:$0xff]
        %s790 = scalar_lea.vmem %s2, 16
        %v791 = vld [vmem:[%s790] sm:$0xff]
        %v792 = vld [vmem:[%s790 + $0x8] sm:$0xff]
        %v794 = vsel %vm593, %v789, 0
        %796 = vmatpush.msra.mxu0 0.0
        %797 = vmatpush.msra.mxu0 0.0
        %798 = vmatpush.msra.mxu0 0.0
        %799 = vmatpush.msra.mxu0 0.0
        %800 = vmatpush.msra.mxu0 0.0
        %801 = vmatpush.msra.mxu0 0.0
        %802 = vmatpush.msra.mxu0 0.0
        %803 = vmatpush.msra.mxu0 0.0
        %804 = vmatpush.msra.mxu0 0.0
        %805 = vmatpush.msra.mxu0 0.0
        %806 = vmatpush.msra.mxu0 0.0
        %807 = vmatpush.msra.mxu0 0.0
        %808 = vmatpush.msra.mxu0 0.0
        %809 = vmatpush.msra.mxu0 0.0
        %810 = vmatpush.msra.mxu0 %v792
        %811 = vmatpush.msra.mxu0 %v791
        %812 = vmatmul.f32.gmra.mxu0 %v794
        %v813 = vpop.f32.mrf.mxu0
        %v814 = vadd.f32 0.0, %v813
        %815 = vdwg.mxu0
        %v817 = vsel %vm494, %v787, 0
        %819 = vmatpush.msra.mxu0 0.0
        %820 = vmatpush.msra.mxu0 0.0
        %821 = vmatpush.msra.mxu0 0.0
        %822 = vmatpush.msra.mxu0 0.0
        %823 = vmatpush.msra.mxu0 0.0
        %824 = vmatpush.msra.mxu0 0.0
        %825 = vmatpush.msra.mxu0 0.0
        %826 = vmatpush.msra.mxu0 0.0
        %827 = vmatpush.msra.mxu0 0.0
        %828 = vmatpush.msra.mxu0 0.0
        %829 = vmatpush.msra.mxu0 0.0
        %830 = vmatpush.msra.mxu0 0.0
        %831 = vmatpush.msra.mxu0 0.0
        %832 = vmatpush.msra.mxu0 0.0
        %833 = vmatpush.msra.mxu0 0.0
        %834 = vmatpush.msra.mxu0 %v588
        %835 = vmatmul.f32.gmra.mxu0 %v817
        %v836 = vpop.f32.mrf.mxu0
        %v837 = vadd.f32 0.0, %v836
        %838 = vdwg.mxu0
        %v839 = vmul.f32 %v837, 0.35355338
        %v840 = vrot.slane %v839, 4
        %v841 = vmax.f32 %v839, %v840
        %v842 = vrot.slane %v841, 2
        %v843 = vmax.f32 %v841, %v842
        %v844 = vrot.slane %v843, 1
        %v845 = vmax.f32 %v843, %v844
        %v846 = vsub.f32 %v839, %v845
        %v847 = vmul.f32 %v846, 1.442695
        %v848 = vpow.pop %v847
        %v849 = vrot.slane %v848, 4
        %v850 = vadd.f32 %v848, %v849
        %v851 = vrot.slane %v850, 2
        %v852 = vadd.f32 %v850, %v851
        %v853 = vrot.slane %v852, 1
        %v854 = vadd.f32 %v852, %v853
        %v855 = vrcp.pop %v854
        %v856 = vmul.f32 %v848, %v855
        %v858 = vsel %vm494, %v814, 0
        %860 = vmatpush.msra.mxu0 0.0
        %861 = vmatpush.msra.mxu0 0.0
        %862 = vmatpush.msra.mxu0 0.0
        %863 = vmatpush.msra.mxu0 0.0
        %864 = vmatpush.msra.mxu0 0.0
        %865 = vmatpush.msra.mxu0 0.0
        %866 = vmatpush.msra.mxu0 0.0
        %867 = vmatpush.msra.mxu0 0.0
        %868 = vmatpush.msra.mxu0 0.0
        %869 = vmatpush.msra.mxu0 0.0
        %870 = vmatpush.msra.mxu0 0.0
        %871 = vmatpush.msra.mxu0 0.0
        %872 = vmatpush.msra.mxu0 0.0
        %873 = vmatpush.msra.mxu0 0.0
        %874 = vmatpush.msra.mxu0 0.0
        %875 = vmatpush.msra.mxu0 %v856
        %876 = vmatmul.f32.gmra.mxu0 %v858
        %v877 = vpop.f32.mrf.mxu0
        %v878 = vadd.f32 0.0, %v877
        %879 = vdwg.mxu0
        %v880 = vld [vmem:[%s468] sm:$0xf]
        %v882 = vsel %vm494, %v880, 0
        %884 = vmatpush.msra.mxu0 0.0
        %885 = vmatpush.msra.mxu0 0.0
        %886 = vmatpush.msra.mxu0 0.0
        %887 = vmatpush.msra.mxu0 0.0
        %888 = vmatpush.msra.mxu0 0.0
        %889 = vmatpush.msra.mxu0 0.0
        %890 = vmatpush.msra.mxu0 0.0
        %891 = vmatpush.msra.mxu0 0.0
        %892 = vmatpush.msra.mxu0 0.0
        %893 = vmatpush.msra.mxu0 0.0
        %894 = vmatpush.msra.mxu0 0.0
        %895 = vmatpush.msra.mxu0 0.0
        %896 = vmatpush.msra.mxu0 0.0
        %897 = vmatpush.msra.mxu0 0.0
        %898 = vmatpush.msra.mxu0 0.0
        %899 = vmatpush.msra.mxu0 %v878
        %900 = vmatmul.f32.gmra.mxu0 %v882
        %v901 = vpop.f32.mrf.mxu0
        %v902 = vadd.f32 0.0, %v901
        %903 = vdwg.mxu0
        %v904 = vld [vmem:[%s472] sm:$0xf]
        %v906 = vsel %vm494, %v904, 0
        %908 = vmatpush.msra.mxu0 0.0
        %909 = vmatpush.msra.mxu0 0.0
        %910 = vmatpush.msra.mxu0 0.0
        %911 = vmatpush.msra.mxu0 0.0
        %912 = vmatpush.msra.mxu0 0.0
        %913 = vmatpush.msra.mxu0 0.0
        %914 = vmatpush.msra.mxu0 0.0
        %915 = vmatpush.msra.mxu0 0.0
        %916 = vmatpush.msra.mxu0 0.0
        %917 = vmatpush.msra.mxu0 0.0
        %918 = vmatpush.msra.mxu0 0.0
        %919 = vmatpush.msra.mxu0 0.0
        %920 = vmatpush.msra.mxu0 0.0
        %921 = vmatpush.msra.mxu0 0.0
        %922 = vmatpush.msra.mxu0 0.0
        %923 = vmatpush.msra.mxu0 %v878
        %924 = vmatmul.f32.gmra.mxu0 %v906
        %v925 = vpop.f32.mrf.mxu0
        %v926 = vadd.f32 0.0, %v925
        %927 = vdwg.mxu0
        %v928 = vmul.f32 %v926, 1.442695
        %v929 = vpow.pop %v928
        %v930 = vrot.slane %v536, 4
        %v932 = vmul.f32 %v929, %v930
        %v933 = vadd.f32 %v932, %v902
        %s934 = scalar_lea.vmem %s482, 8
        %935 = vst [vmem:[%s934] sm:$0xff] %v856
        %936 = vst [vmem:[#allocation2] sm:$0xf] %v516
        %937 = vst [vmem:[#allocation2 + $0x8] sm:$0xf] %v536
        %v940 = vrot.slane %v760, 4
        %v941 = vrot.slane %v933, 4
        %944 = vst [vmem:[#allocation2] sm:$0xf0] %v940
        %945 = vst [vmem:[#allocation2 + $0x8] sm:$0xf0] %v941
        %v948 = vrot.slane %v926, 4
        %v949 = vsel %vm543, %v753, %v948
        %951 = vst [vmem:[%s477] sm:$0xff] %v949
        %p952 = scmp.eq.s32.totalorder %s24, 1
        // Predicated region
        $region61: #{waveglow_forward.1} parent=55 // pred_check
          %p953 = pneg %p952
        $region62: #{waveglow_forward.1} parent=55 // pred_check_branch
          %955 = sbr.rel (%p953) target = $region64
        $region63: #{waveglow_forward.1} parent=55 // pred_region
          %v956 = vld [vmem:[#allocation2] sm:$0xff]
          %v957 = vld [vmem:[#allocation2 + $0x8] sm:$0xff]
          %958 = vst [vmem:[#allocation3] sm:$0xff] %v956
          %959 = vst [vmem:[#allocation3 + $0x8] sm:$0xff] %v957
        $region64: #{waveglow_forward.1} parent=55 // pred_fallthru
          _
        %p960 = scmp.lt.s32.totalorder %s24, 1
        %s961 = scalar_select %p960, %s24, 1
        %s962 = smul.addr %s961, 2
        %s963 = smul.addr %s962, 4
        %s964 = scalar_lea.vmem %s10, %s963
        %p965 = scmp.lt.s32.totalorder %s24, 1
        %s966 = scalar_select %p965, %s24, 1
        %s967 = smul.addr %s966, 2
        %s968 = smul.addr %s967, 8
        %s969 = scalar_lea.vmem %s11, %s968
        // Predicated region
        $region65: #{waveglow_forward.1} parent=55 // pred_check
          %p970 = pneg %p256
        $region66: #{waveglow_forward.1} parent=55 // pred_check_branch
          %972 = sbr.rel (%p970) target = $region68
        $region67: #{waveglow_forward.1} parent=55 // pred_region
          %974 = vsyncadd [#allocation4], 0
          %s976 = sshll.u32 [#allocation3], 4
          %s977 = int_to_ptr.vmem [resolvable:$true] %s976
          %s978 = sshll.u32 %s9, 4
          %s979 = int_to_ptr.hbm [resolvable:$true] %s978
          %981 = dma.vmem_to_hbm [thread:$0]  %s977, 256, %s979, [#allocation4]
        $region68: #{waveglow_forward.1} parent=55 // pred_fallthru
          _
        // Predicated region
        $region69: #{waveglow_forward.1} parent=55 // pred_check
          %p982 = pneg %p282
        $region70: #{waveglow_forward.1} parent=55 // pred_check_branch
          %984 = sbr.rel (%p982) target = $region72
        $region71: #{waveglow_forward.1} parent=55 // pred_region
          _
        $region72: #{waveglow_forward.1} parent=55 // pred_fallthru
          _
        // Predicated region
        $region73: #{waveglow_forward.1} parent=55 // pred_check
          %p985 = pneg %p308
        $region74: #{waveglow_forward.1} parent=55 // pred_check_branch
          %987 = sbr.rel (%p985) target = $region76
        $region75: #{waveglow_forward.1} parent=55 // pred_region
          _
        $region76: #{waveglow_forward.1} parent=55 // pred_fallthru
          _
        // Predicated region
        $region77: #{waveglow_forward.1} parent=55 // pred_check
          %p988 = pneg %p256
        $region78: #{waveglow_forward.1} parent=55 // pred_check_branch
          %990 = sbr.rel (%p988) target = $region80
        $region79: #{waveglow_forward.1} parent=55 // pred_region
          %992 = dma.done [#allocation4], 256
        $region80: #{waveglow_forward.1} parent=55 // pred_fallthru
          _
      $region56: #{waveglow_forward.1} parent=5 // pred_fallthru
        _
      %p993 = scmp.le.s32.totalorder 2, %s19
      // Predicated region
      $region81: #{waveglow_forward.1} parent=5 // pred_check
        %p994 = pneg %p993
      $region82: #{waveglow_forward.1} parent=5 // pred_check_branch
        %996 = sbr.rel (%p994) target = $region84
      $region83: #{waveglow_forward.1} parent=5 // pred_region
        %s997 = ssub.s32 %s19, 2
        // Predicated region
        $region85: #{waveglow_forward.1} parent=83 // pred_check
          %p998 = pneg %p288
        $region86: #{waveglow_forward.1} parent=83 // pred_check_branch
          %1000 = sbr.rel (%p998) target = $region88
        $region87: #{waveglow_forward.1} parent=83 // pred_region
          %p1001 = scmp.lt.s32.totalorder %s25, 1
          %s1002 = scalar_select %p1001, %s25, 1
          %s1003 = smul.addr %s1002, 2
          %s1004 = smul.addr %s1003, 4
          %s1005 = scalar_lea.vmem %s10, %s1004
        $region88: #{waveglow_forward.1} parent=83 // pred_fallthru
          _
        // Predicated region
        $region89: #{waveglow_forward.1} parent=83 // pred_check
          %p1006 = pneg %p314
        $region90: #{waveglow_forward.1} parent=83 // pred_check_branch
          %1008 = sbr.rel (%p1006) target = $region92
        $region91: #{waveglow_forward.1} parent=83 // pred_region
          %p1009 = scmp.lt.s32.totalorder %s25, 1
          %s1010 = scalar_select %p1009, %s25, 1
          %s1011 = smul.addr %s1010, 2
          %s1012 = smul.addr %s1011, 8
          %s1013 = scalar_lea.vmem %s11, %s1012
        $region92: #{waveglow_forward.1} parent=83 // pred_fallthru
          _
      $region84: #{waveglow_forward.1} parent=5 // pred_fallthru
        _
    $region6: #{waveglow_forward.1} parent=1 // loop_footer
      %s23 = sadd.s32 1, %s19
    $region7: #{waveglow_forward.1} parent=1 // loop_footer_branch
      %18 = sbr.rel target = $region3
    $region8: #{waveglow_forward.1} parent=1 // loop_exit
      _
    %1014 = vsyncpa [#allocation4], 1
    %s1015 = scalar_lea.sflag [#allocation4], 1
    %1016 = vsyncpa %s1015, 1

</llo_original>
